<compile_context>
chip_gen: v7x
topology: tpu7x:2x2x1
jax: 0.10.0
libtpu: 0.0.40
codegen_flags: <defaults>
</compile_context>

<pallas_src>
import functools

import jax
import jax.numpy as jnp
from jax import lax
from jax.experimental import pallas as pl
from jax.experimental.pallas import tpu as pltpu


def _round_up(v, m):
    return (v + m - 1) // m * m


# ----------------------------- fused Pallas kernel ---------------------------

def fused_forward_kernel(xf_ref, wc_ref, bc_ref, w1_ref, b1_ref, w2_ref, b2_ref,
                         o_ref, patch_ref, *, kh_sz, kw_sz, row_stride, ps, ic, oc,
                         out_dim):
    """conv(4x4, pad=1) -> ReLU -> fc1 -> ReLU -> fc2 -> clip for ONE batch element.

    xf_ref:    (IC, PH*S)        zero-padded image, rows flattened with stride S
    wc_ref:    (OC, KH*KW*IC)    shared conv weight (im2col-merged, batch-agnostic)
    bc_ref:    (OC, 1)           conv bias
    w1_ref:    (OC, OH*S, FCP)   fc1 weight scattered on the flat grid (junk cols = 0)
    b1_ref:    (1, FCP)   w2_ref: (FCP, FCP)   b2_ref: (1, FCP)
    o_ref:     (1, OUT)          one output row
    patch_ref: (KH*KW*IC, OH*S)  im2col staging scratch
    """
    # --- in-kernel im2col: stack every tap's contiguous lane-slice on sublanes ----
    for t in range(kh_sz * kw_sz):
        off = (t // kw_sz) * row_stride + (t % kw_sz)      # static lane offset
        patch_ref[t * ic:(t + 1) * ic, :] = xf_ref[:, pl.ds(off, ps)]

    # --- conv: ONE K = KH*KW*IC matmul (replaces 16 tiny K=8 matmuls + VPU adds) --
    r = jnp.dot(wc_ref[...], patch_ref[...],
                preferred_element_type=jnp.float32)        # (OC, OH*S)
    r = jnp.maximum(r + bc_ref[...], 0.0)                  # conv bias + first ReLU

    # --- fc1: contract each conv channel against its scattered weight slab -------
    hvec = b1_ref[...]                                     # (1, FCP)
    for c in range(oc):
        hvec = hvec + jnp.dot(r[c:c + 1, :], w1_ref[c],
                              preferred_element_type=jnp.float32)
    hvec = jnp.maximum(hvec, 0.0)                          # ReLU(fc1)

    # --- fc2 + clip (padded cols stay exactly 0; only the first OUT are stored) --
    y = jnp.dot(hvec, w2_ref[...], preferred_element_type=jnp.float32) + b2_ref[...]
    o_ref[...] = jnp.clip(y[:, :out_dim], -100.0, 100.0)


# ----------------------------- one-time parameter prep -----------------------

def prepare_params(params, image_hw=(28, 28), pad=1):
    """Repack PyTorch-layout parameters once.  Batch-size agnostic."""
    conv_w = params["conv_w"]          # (OC, IC, KH, KW)
    conv_b = params["conv_b"]          # (OC,)
    fc1_w = params["fc1_w"]            # (OC*OH*OW, H1)  stored (in, out)
    fc1_b = params["fc1_b"]            # (H1,)
    fc2_w = params["fc2_w"]            # (H1, H2)        stored (in, out)
    fc2_b = params["fc2_b"]            # (H2,)

    oc, ic, kh, kw = conv_w.shape
    h, w = image_hw
    oh = h + 2 * pad - kh + 1
    ow = w + 2 * pad - kw + 1
    s = w + 2 * pad                    # flat row stride (= conv-padded width)
    ph = h + 2 * pad + 1               # conv-padded rows + 1 spare row for the shifts
    ps = oh * s                        # flat conv-output length (incl. junk columns)
    assert (kh - 1) * s + (kw - 1) + ps <= ph * s   # every tap slice stays in bounds

    # Shared conv weight for the merged im2col matmul; patch-row order is (kh, kw, ic).
    wc = jnp.transpose(conv_w, (0, 2, 3, 1)).reshape(oc, kh * kw * ic)
    bc = conv_b.reshape(oc, 1)

    h1 = fc1_w.shape[1]
    h2 = fc2_w.shape[1]
    fcp = _round_up(max(h1, h2), 8)    # 10 -> 16 (NOT 128: keep the HBM arrays small)

    # fc1 weights: fold the NCHW flatten order in, scatter onto the (oh, S) flat
    # grid with zero weight in the S-OW junk columns, pad outputs 10 -> 16.
    w1 = fc1_w.reshape(oc, oh, ow, h1)
    w1 = jnp.pad(w1, ((0, 0), (0, 0), (0, s - ow), (0, fcp - h1)))
    w1 = w1.reshape(oc, oh * s, fcp)
    b1 = jnp.pad(fc1_b, (0, fcp - h1)).reshape(1, fcp)

    w2 = jnp.pad(fc2_w, ((0, fcp - h1), (0, fcp - h2)))
    b2 = jnp.pad(fc2_b, (0, fcp - h2)).reshape(1, fcp)

    prep = dict(wc=wc, bc=bc, w1=w1, b1=b1, w2=w2, b2=b2)
    geom = dict(kh=kh, kw=kw, s=s, ph=ph, ps=ps, ic=ic, oc=oc, pad=pad,
                fcp=fcp, out_dim=h2)
    return prep, geom


# ----------------------------- forward wrapper -------------------------------

def make_forward_fn(geom):
    kh, kw, s, ph, ps, ic, oc, pad, fcp, out_dim = (
        geom["kh"], geom["kw"], geom["s"], geom["ph"], geom["ps"],
        geom["ic"], geom["oc"], geom["pad"], geom["fcp"], geom["out_dim"])

    kernel = functools.partial(
        fused_forward_kernel, kh_sz=kh, kw_sz=kw, row_stride=s, ps=ps,
        ic=ic, oc=oc, out_dim=out_dim)

    @jax.jit
    def forward(x, prep):
        n, xc, xh, xw = x.shape
        # conv zero-padding plus one spare row so every tap is a contiguous
        # lane-slice of the flattened rows (single ~30 KB XLA fusion).
        xp = jnp.pad(x, ((0, 0), (0, 0), (pad, ph - xh - pad), (pad, s - xw - pad)))
        xf = xp.reshape(n, xc, ph * s)

        y = pl.pallas_call(
            kernel,
            out_shape=jax.ShapeDtypeStruct((n, 1, out_dim), jnp.float32),
            grid_spec=pltpu.PrefetchScalarGridSpec(
                num_scalar_prefetch=0,
                grid=(n,),
                in_specs=[
                    # per-example activation block streams; weights have constant
                    # index_maps -> DMA'd once per core, VMEM-resident after that.
                    pl.BlockSpec((None, ic, ph * s), lambda i: (i, 0, 0)),
                    pl.BlockSpec((oc, kh * kw * ic), lambda i: (0, 0)),
                    pl.BlockSpec((oc, 1), lambda i: (0, 0)),
                    pl.BlockSpec((oc, ps, fcp), lambda i: (0, 0, 0)),
                    pl.BlockSpec((1, fcp), lambda i: (0, 0)),
                    pl.BlockSpec((fcp, fcp), lambda i: (0, 0)),
                    pl.BlockSpec((1, fcp), lambda i: (0, 0)),
                ],
                out_specs=pl.BlockSpec((None, 1, out_dim), lambda i: (i, 0, 0)),
                scratch_shapes=[pltpu.VMEM((kh * kw * ic, ps), jnp.float32)],
            ),
            compiler_params=pltpu.CompilerParams(
                dimension_semantics=("parallel",)),
        )(xf, prep["wc"], prep["bc"], prep["w1"], prep["b1"],
          prep["w2"], prep["b2"])
        return y.reshape(-1)                               # final .flatten()

    return forward


# ----------------------------- params / main ---------------------------------

def xavier_uniform(key, shape, fan_in, fan_out):
    bound = float(jnp.sqrt(6.0 / (fan_in + fan_out)))
    return jax.random.uniform(key, shape, jnp.float32, -bound, bound)


if __name__ == "__main__":
    key = jax.random.PRNGKey(0)
    k_conv, k_fc1, k_fc2, k_x = jax.random.split(key, 4)

    # module defaults: start_channel=4, image 28x28, channels=[2], convs=[4],
    # strides=[1], pads=[1], fc1_p=[10, 10]
    N, C, H, W = 2, 4, 28, 28
    OC, KH = 2, 4
    PAD = 1
    OH = OW = (H + 2 * PAD - KH) + 1                     # 27
    conv_dim = OC * OH * OW                              # 1458

    params = {
        "conv_w": xavier_uniform(k_conv, (OC, C, KH, KH), C * KH * KH, OC * KH * KH),
        "conv_b": jnp.zeros((OC,), jnp.float32),
        "fc1_w": xavier_uniform(k_fc1, (conv_dim, 10), conv_dim, 10),
        "fc1_b": jnp.zeros((10,), jnp.float32),
        "fc2_w": xavier_uniform(k_fc2, (10, 10), 10, 10),
        "fc2_b": jnp.zeros((10,), jnp.float32),
    }
    x = jax.random.normal(k_x, (N, C, H, W), jnp.float32)

    prep, geom = prepare_params(params, image_hw=(H, W), pad=PAD)
    forward = make_forward_fn(geom)

    out = jax.block_until_ready(forward(x, prep))
    assert out.shape == (N * 10,), out.shape

    # pure-JAX reference for correctness
    ref_conv = lax.conv_general_dilated(
        x, params["conv_w"], window_strides=(1, 1),
        padding=((PAD, PAD), (PAD, PAD)),
        dimension_numbers=("NCHW", "OIHW", "NCHW"),
    ) + params["conv_b"][None, :, None, None]
    ref = jnp.maximum(ref_conv.reshape(N, -1), 0.0)
    ref = jnp.maximum(ref @ params["fc1_w"] + params["fc1_b"], 0.0)
    ref = ref @ params["fc2_w"] + params["fc2_b"]
    ref = jnp.clip(ref, -100.0, 100.0).reshape(-1)
    err = float(jnp.max(jnp.abs(out - ref)))
    assert jnp.allclose(out, ref, atol=2e-4, rtol=2e-4), err

    print("KERNEL_OK")
</pallas_src>

<mosaic_0001>
module attributes {stable_mosaic.version = 11 : i64} {
  func.func @fused_forward_kernel(%arg0: i32, %arg1: memref<1x4x930xf32, #tpu.memory_space<vmem>>, %arg2: memref<2x64xf32, #tpu.memory_space<vmem>>, %arg3: memref<2x1xf32, #tpu.memory_space<vmem>>, %arg4: memref<2x810x16xf32, #tpu.memory_space<vmem>>, %arg5: memref<1x16xf32, #tpu.memory_space<vmem>>, %arg6: memref<16x16xf32, #tpu.memory_space<vmem>>, %arg7: memref<1x16xf32, #tpu.memory_space<vmem>>, %arg8: memref<1x1x10xf32, #tpu.memory_space<vmem>>, %arg9: memref<64x810xf32, #tpu.memory_space<vmem>>) attributes {dimension_semantics = [#tpu.dimension_semantics<parallel>], iteration_bounds = array<i64: 2>, scalar_prefetch = 0 : i64, scratch_operands = 1 : i64, tpu.core_type = #tpu.core_type<tc>, window_params = [{transform_indices = @transform_0, window_bounds = array<i64: 1, 4, 930>}, {pipeline_mode = #tpu.pipeline_mode<synchronous>, transform_indices = @transform_1, window_bounds = array<i64: 2, 64>}, {pipeline_mode = #tpu.pipeline_mode<synchronous>, transform_indices = @transform_2, window_bounds = array<i64: 2, 1>}, {pipeline_mode = #tpu.pipeline_mode<synchronous>, transform_indices = @transform_3, window_bounds = array<i64: 2, 810, 16>}, {pipeline_mode = #tpu.pipeline_mode<synchronous>, transform_indices = @transform_4, window_bounds = array<i64: 1, 16>}, {pipeline_mode = #tpu.pipeline_mode<synchronous>, transform_indices = @transform_5, window_bounds = array<i64: 16, 16>}, {pipeline_mode = #tpu.pipeline_mode<synchronous>, transform_indices = @transform_6, window_bounds = array<i64: 1, 16>}, {transform_indices = @transform_7, window_bounds = array<i64: 1, 1, 10>}]} {
    %c0 = arith.constant 0 : index
    %c0_0 = arith.constant 0 : index
    %c0_1 = arith.constant 0 : index
    %0 = vector.load %arg1[%c0, %c0_0, %c0_1] : memref<1x4x930xf32, #tpu.memory_space<vmem>>, vector<1x4x810xf32>
    %1 = vector.shape_cast %0 : vector<1x4x810xf32> to vector<4x810xf32>
    %c0_2 = arith.constant 0 : index
    %c0_3 = arith.constant 0 : index
    %2 = vector.load %arg9[%c0_2, %c0_3] : memref<64x810xf32, #tpu.memory_space<vmem>>, vector<4x810xf32>
    tpu.vector_store %arg9[%c0_2, %c0_3], %1 {strides = array<i32>} : memref<64x810xf32, #tpu.memory_space<vmem>>, vector<4x810xf32>,
    %c0_4 = arith.constant 0 : index
    %c0_5 = arith.constant 0 : index
    %c1 = arith.constant 1 : index
    %3 = vector.load %arg1[%c0_4, %c0_5, %c1] : memref<1x4x930xf32, #tpu.memory_space<vmem>>, vector<1x4x810xf32>
    %4 = vector.shape_cast %3 : vector<1x4x810xf32> to vector<4x810xf32>
    %c4 = arith.constant 4 : index
    %c0_6 = arith.constant 0 : index
    %5 = vector.load %arg9[%c4, %c0_6] : memref<64x810xf32, #tpu.memory_space<vmem>>, vector<4x810xf32>
    tpu.vector_store %arg9[%c4, %c0_6], %4 {strides = array<i32>} : memref<64x810xf32, #tpu.memory_space<vmem>>, vector<4x810xf32>,
    %c0_7 = arith.constant 0 : index
    %c0_8 = arith.constant 0 : index
    %c2 = arith.constant 2 : index
    %6 = vector.load %arg1[%c0_7, %c0_8, %c2] : memref<1x4x930xf32, #tpu.memory_space<vmem>>, vector<1x4x810xf32>
    %7 = vector.shape_cast %6 : vector<1x4x810xf32> to vector<4x810xf32>
    %c8 = arith.constant 8 : index
    %c0_9 = arith.constant 0 : index
    %8 = vector.load %arg9[%c8, %c0_9] : memref<64x810xf32, #tpu.memory_space<vmem>>, vector<4x810xf32>
    tpu.vector_store %arg9[%c8, %c0_9], %7 {strides = array<i32>} : memref<64x810xf32, #tpu.memory_space<vmem>>, vector<4x810xf32>,
    %c0_10 = arith.constant 0 : index
    %c0_11 = arith.constant 0 : index
    %c3 = arith.constant 3 : index
    %9 = vector.load %arg1[%c0_10, %c0_11, %c3] : memref<1x4x930xf32, #tpu.memory_space<vmem>>, vector<1x4x810xf32>
    %10 = vector.shape_cast %9 : vector<1x4x810xf32> to vector<4x810xf32>
    %c12 = arith.constant 12 : index
    %c0_12 = arith.constant 0 : index
    %11 = vector.load %arg9[%c12, %c0_12] : memref<64x810xf32, #tpu.memory_space<vmem>>, vector<4x810xf32>
    tpu.vector_store %arg9[%c12, %c0_12], %10 {strides = array<i32>} : memref<64x810xf32, #tpu.memory_space<vmem>>, vector<4x810xf32>,
    %c0_13 = arith.constant 0 : index
    %c0_14 = arith.constant 0 : index
    %c30 = arith.constant 30 : index
    %12 = vector.load %arg1[%c0_13, %c0_14, %c30] : memref<1x4x930xf32, #tpu.memory_space<vmem>>, vector<1x4x810xf32>
    %13 = vector.shape_cast %12 : vector<1x4x810xf32> to vector<4x810xf32>
    %c16 = arith.constant 16 : index
    %c0_15 = arith.constant 0 : index
    %14 = vector.load %arg9[%c16, %c0_15] : memref<64x810xf32, #tpu.memory_space<vmem>>, vector<4x810xf32>
    tpu.vector_store %arg9[%c16, %c0_15], %13 {strides = array<i32>} : memref<64x810xf32, #tpu.memory_space<vmem>>, vector<4x810xf32>,
    %c0_16 = arith.constant 0 : index
    %c0_17 = arith.constant 0 : index
    %c31 = arith.constant 31 : index
    %15 = vector.load %arg1[%c0_16, %c0_17, %c31] : memref<1x4x930xf32, #tpu.memory_space<vmem>>, vector<1x4x810xf32>
    %16 = vector.shape_cast %15 : vector<1x4x810xf32> to vector<4x810xf32>
    %c20 = arith.constant 20 : index
    %c0_18 = arith.constant 0 : index
    %17 = vector.load %arg9[%c20, %c0_18] : memref<64x810xf32, #tpu.memory_space<vmem>>, vector<4x810xf32>
    tpu.vector_store %arg9[%c20, %c0_18], %16 {strides = array<i32>} : memref<64x810xf32, #tpu.memory_space<vmem>>, vector<4x810xf32>,
    %c0_19 = arith.constant 0 : index
    %c0_20 = arith.constant 0 : index
    %c32 = arith.constant 32 : index
    %18 = vector.load %arg1[%c0_19, %c0_20, %c32] : memref<1x4x930xf32, #tpu.memory_space<vmem>>, vector<1x4x810xf32>
    %19 = vector.shape_cast %18 : vector<1x4x810xf32> to vector<4x810xf32>
    %c24 = arith.constant 24 : index
    %c0_21 = arith.constant 0 : index
    %20 = vector.load %arg9[%c24, %c0_21] : memref<64x810xf32, #tpu.memory_space<vmem>>, vector<4x810xf32>
    tpu.vector_store %arg9[%c24, %c0_21], %19 {strides = array<i32>} : memref<64x810xf32, #tpu.memory_space<vmem>>, vector<4x810xf32>,
    %c0_22 = arith.constant 0 : index
    %c0_23 = arith.constant 0 : index
    %c33 = arith.constant 33 : index
    %21 = vector.load %arg1[%c0_22, %c0_23, %c33] : memref<1x4x930xf32, #tpu.memory_space<vmem>>, vector<1x4x810xf32>
    %22 = vector.shape_cast %21 : vector<1x4x810xf32> to vector<4x810xf32>
    %c28 = arith.constant 28 : index
    %c0_24 = arith.constant 0 : index
    %23 = vector.load %arg9[%c28, %c0_24] : memref<64x810xf32, #tpu.memory_space<vmem>>, vector<4x810xf32>
    tpu.vector_store %arg9[%c28, %c0_24], %22 {strides = array<i32>} : memref<64x810xf32, #tpu.memory_space<vmem>>, vector<4x810xf32>,
    %c0_25 = arith.constant 0 : index
    %c0_26 = arith.constant 0 : index
    %c60 = arith.constant 60 : index
    %24 = vector.load %arg1[%c0_25, %c0_26, %c60] : memref<1x4x930xf32, #tpu.memory_space<vmem>>, vector<1x4x810xf32>
    %25 = vector.shape_cast %24 : vector<1x4x810xf32> to vector<4x810xf32>
    %c32_27 = arith.constant 32 : index
    %c0_28 = arith.constant 0 : index
    %26 = vector.load %arg9[%c32_27, %c0_28] : memref<64x810xf32, #tpu.memory_space<vmem>>, vector<4x810xf32>
    tpu.vector_store %arg9[%c32_27, %c0_28], %25 {strides = array<i32>} : memref<64x810xf32, #tpu.memory_space<vmem>>, vector<4x810xf32>,
    %c0_29 = arith.constant 0 : index
    %c0_30 = arith.constant 0 : index
    %c61 = arith.constant 61 : index
    %27 = vector.load %arg1[%c0_29, %c0_30, %c61] : memref<1x4x930xf32, #tpu.memory_space<vmem>>, vector<1x4x810xf32>
    %28 = vector.shape_cast %27 : vector<1x4x810xf32> to vector<4x810xf32>
    %c36 = arith.constant 36 : index
    %c0_31 = arith.constant 0 : index
    %29 = vector.load %arg9[%c36, %c0_31] : memref<64x810xf32, #tpu.memory_space<vmem>>, vector<4x810xf32>
    tpu.vector_store %arg9[%c36, %c0_31], %28 {strides = array<i32>} : memref<64x810xf32, #tpu.memory_space<vmem>>, vector<4x810xf32>,
    %c0_32 = arith.constant 0 : index
    %c0_33 = arith.constant 0 : index
    %c62 = arith.constant 62 : index
    %30 = vector.load %arg1[%c0_32, %c0_33, %c62] : memref<1x4x930xf32, #tpu.memory_space<vmem>>, vector<1x4x810xf32>
    %31 = vector.shape_cast %30 : vector<1x4x810xf32> to vector<4x810xf32>
    %c40 = arith.constant 40 : index
    %c0_34 = arith.constant 0 : index
    %32 = vector.load %arg9[%c40, %c0_34] : memref<64x810xf32, #tpu.memory_space<vmem>>, vector<4x810xf32>
    tpu.vector_store %arg9[%c40, %c0_34], %31 {strides = array<i32>} : memref<64x810xf32, #tpu.memory_space<vmem>>, vector<4x810xf32>,
    %c0_35 = arith.constant 0 : index
    %c0_36 = arith.constant 0 : index
    %c63 = arith.constant 63 : index
    %33 = vector.load %arg1[%c0_35, %c0_36, %c63] : memref<1x4x930xf32, #tpu.memory_space<vmem>>, vector<1x4x810xf32>
    %34 = vector.shape_cast %33 : vector<1x4x810xf32> to vector<4x810xf32>
    %c44 = arith.constant 44 : index
    %c0_37 = arith.constant 0 : index
    %35 = vector.load %arg9[%c44, %c0_37] : memref<64x810xf32, #tpu.memory_space<vmem>>, vector<4x810xf32>
    tpu.vector_store %arg9[%c44, %c0_37], %34 {strides = array<i32>} : memref<64x810xf32, #tpu.memory_space<vmem>>, vector<4x810xf32>,
    %c0_38 = arith.constant 0 : index
    %c0_39 = arith.constant 0 : index
    %c90 = arith.constant 90 : index
    %36 = vector.load %arg1[%c0_38, %c0_39, %c90] : memref<1x4x930xf32, #tpu.memory_space<vmem>>, vector<1x4x810xf32>
    %37 = vector.shape_cast %36 : vector<1x4x810xf32> to vector<4x810xf32>
    %c48 = arith.constant 48 : index
    %c0_40 = arith.constant 0 : index
    %38 = vector.load %arg9[%c48, %c0_40] : memref<64x810xf32, #tpu.memory_space<vmem>>, vector<4x810xf32>
    tpu.vector_store %arg9[%c48, %c0_40], %37 {strides = array<i32>} : memref<64x810xf32, #tpu.memory_space<vmem>>, vector<4x810xf32>,
    %c0_41 = arith.constant 0 : index
    %c0_42 = arith.constant 0 : index
    %c91 = arith.constant 91 : index
    %39 = vector.load %arg1[%c0_41, %c0_42, %c91] : memref<1x4x930xf32, #tpu.memory_space<vmem>>, vector<1x4x810xf32>
    %40 = vector.shape_cast %39 : vector<1x4x810xf32> to vector<4x810xf32>
    %c52 = arith.constant 52 : index
    %c0_43 = arith.constant 0 : index
    %41 = vector.load %arg9[%c52, %c0_43] : memref<64x810xf32, #tpu.memory_space<vmem>>, vector<4x810xf32>
    tpu.vector_store %arg9[%c52, %c0_43], %40 {strides = array<i32>} : memref<64x810xf32, #tpu.memory_space<vmem>>, vector<4x810xf32>,
    %c0_44 = arith.constant 0 : index
    %c0_45 = arith.constant 0 : index
    %c92 = arith.constant 92 : index
    %42 = vector.load %arg1[%c0_44, %c0_45, %c92] : memref<1x4x930xf32, #tpu.memory_space<vmem>>, vector<1x4x810xf32>
    %43 = vector.shape_cast %42 : vector<1x4x810xf32> to vector<4x810xf32>
    %c56 = arith.constant 56 : index
    %c0_46 = arith.constant 0 : index
    %44 = vector.load %arg9[%c56, %c0_46] : memref<64x810xf32, #tpu.memory_space<vmem>>, vector<4x810xf32>
    tpu.vector_store %arg9[%c56, %c0_46], %43 {strides = array<i32>} : memref<64x810xf32, #tpu.memory_space<vmem>>, vector<4x810xf32>,
    %c0_47 = arith.constant 0 : index
    %c0_48 = arith.constant 0 : index
    %c93 = arith.constant 93 : index
    %45 = vector.load %arg1[%c0_47, %c0_48, %c93] : memref<1x4x930xf32, #tpu.memory_space<vmem>>, vector<1x4x810xf32>
    %46 = vector.shape_cast %45 : vector<1x4x810xf32> to vector<4x810xf32>
    %c60_49 = arith.constant 60 : index
    %c0_50 = arith.constant 0 : index
    %47 = vector.load %arg9[%c60_49, %c0_50] : memref<64x810xf32, #tpu.memory_space<vmem>>, vector<4x810xf32>
    tpu.vector_store %arg9[%c60_49, %c0_50], %46 {strides = array<i32>} : memref<64x810xf32, #tpu.memory_space<vmem>>, vector<4x810xf32>,
    %c0_51 = arith.constant 0 : index
    %c0_52 = arith.constant 0 : index
    %48 = vector.load %arg2[%c0_51, %c0_52] : memref<2x64xf32, #tpu.memory_space<vmem>>, vector<2x64xf32>
    %c0_53 = arith.constant 0 : index
    %c0_54 = arith.constant 0 : index
    %49 = vector.load %arg9[%c0_53, %c0_54] : memref<64x810xf32, #tpu.memory_space<vmem>>, vector<64x810xf32>
    %cst = arith.constant dense<0.000000e+00> : vector<2x810xf32>
    %50 = tpu.matmul %48, %49, %cst {dimension_numbers = #tpu.dot_dimension_numbers<[1], [0], [0], [1], [0, 0, 1, 1], [], []>} : vector<2x64xf32>, vector<64x810xf32>, vector<2x810xf32> -> vector<2x810xf32>
    %c0_55 = arith.constant 0 : index
    %c0_56 = arith.constant 0 : index
    %51 = vector.load %arg3[%c0_55, %c0_56] : memref<2x1xf32, #tpu.memory_space<vmem>>, vector<2x1xf32>
    %52 = vector.broadcast %51 : vector<2x1xf32> to vector<2x810xf32>
    %53 = arith.addf %50, %52 : vector<2x810xf32>
    %cst_57 = arith.constant 0.000000e+00 : f32
    %54 = vector.broadcast %cst_57 : f32 to vector<2x810xf32>
    %55 = arith.maximumf %53, %54 : vector<2x810xf32>
    %c0_58 = arith.constant 0 : index
    %c0_59 = arith.constant 0 : index
    %56 = vector.load %arg5[%c0_58, %c0_59] : memref<1x16xf32, #tpu.memory_space<vmem>>, vector<1x16xf32>
    %57 = vector.extract_strided_slice %55 {offsets = [0, 0], sizes = [1, 810], strides = [1, 1]} : vector<2x810xf32> to vector<1x810xf32>
    %c0_60 = arith.constant 0 : index
    %c0_61 = arith.constant 0 : index
    %c0_62 = arith.constant 0 : index
    %58 = vector.load %arg4[%c0_60, %c0_61, %c0_62] : memref<2x810x16xf32, #tpu.memory_space<vmem>>, vector<1x810x16xf32>
    %59 = vector.shape_cast %58 : vector<1x810x16xf32> to vector<810x16xf32>
    %cst_63 = arith.constant dense<0.000000e+00> : vector<1x16xf32>
    %60 = tpu.matmul %57, %59, %cst_63 {dimension_numbers = #tpu.dot_dimension_numbers<[1], [0], [0], [1], [0, 0, 1, 1], [], []>} : vector<1x810xf32>, vector<810x16xf32>, vector<1x16xf32> -> vector<1x16xf32>
    %61 = arith.addf %56, %60 : vector<1x16xf32>
    %62 = vector.extract_strided_slice %55 {offsets = [1, 0], sizes = [1, 810], strides = [1, 1]} : vector<2x810xf32> to vector<1x810xf32>
    %c1_64 = arith.constant 1 : index
    %c0_65 = arith.constant 0 : index
    %c0_66 = arith.constant 0 : index
    %63 = vector.load %arg4[%c1_64, %c0_65, %c0_66] : memref<2x810x16xf32, #tpu.memory_space<vmem>>, vector<1x810x16xf32>
    %64 = vector.shape_cast %63 : vector<1x810x16xf32> to vector<810x16xf32>
    %cst_67 = arith.constant dense<0.000000e+00> : vector<1x16xf32>
    %65 = tpu.matmul %62, %64, %cst_67 {dimension_numbers = #tpu.dot_dimension_numbers<[1], [0], [0], [1], [0, 0, 1, 1], [], []>} : vector<1x810xf32>, vector<810x16xf32>, vector<1x16xf32> -> vector<1x16xf32>
    %66 = arith.addf %61, %65 : vector<1x16xf32>
    %cst_68 = arith.constant 0.000000e+00 : f32
    %67 = vector.broadcast %cst_68 : f32 to vector<1x16xf32>
    %68 = arith.maximumf %66, %67 : vector<1x16xf32>
    %c0_69 = arith.constant 0 : index
    %c0_70 = arith.constant 0 : index
    %69 = vector.load %arg6[%c0_69, %c0_70] : memref<16x16xf32, #tpu.memory_space<vmem>>, vector<16x16xf32>
    %cst_71 = arith.constant dense<0.000000e+00> : vector<1x16xf32>
    %70 = tpu.matmul %68, %69, %cst_71 {dimension_numbers = #tpu.dot_dimension_numbers<[1], [0], [0], [1], [0, 0, 1, 1], [], []>} : vector<1x16xf32>, vector<16x16xf32>, vector<1x16xf32> -> vector<1x16xf32>
    %c0_72 = arith.constant 0 : index
    %c0_73 = arith.constant 0 : index
    %71 = vector.load %arg7[%c0_72, %c0_73] : memref<1x16xf32, #tpu.memory_space<vmem>>, vector<1x16xf32>
    %72 = arith.addf %70, %71 : vector<1x16xf32>
    %73 = vector.extract_strided_slice %72 {offsets = [0, 0], sizes = [1, 10], strides = [1, 1]} : vector<1x16xf32> to vector<1x10xf32>
    %cst_74 = arith.constant -1.000000e+02 : f32
    %cst_75 = arith.constant 1.000000e+02 : f32
    %74 = vector.broadcast %cst_74 : f32 to vector<1x10xf32>
    %75 = arith.maximumf %74, %73 : vector<1x10xf32>
    %76 = vector.broadcast %cst_75 : f32 to vector<1x10xf32>
    %77 = arith.minimumf %76, %75 : vector<1x10xf32>
    %c0_76 = arith.constant 0 : index
    %c0_77 = arith.constant 0 : index
    %c0_78 = arith.constant 0 : index
    %78 = vector.load %arg8[%c0_76, %c0_77, %c0_78] : memref<1x1x10xf32, #tpu.memory_space<vmem>>, vector<1x1x10xf32>
    %79 = vector.shape_cast %78 : vector<1x1x10xf32> to vector<1x10xf32>
    %80 = vector.shape_cast %77 : vector<1x10xf32> to vector<1x1x10xf32>
    tpu.vector_store %arg8[%c0_76, %c0_77, %c0_78], %80 {strides = array<i32>} : memref<1x1x10xf32, #tpu.memory_space<vmem>>, vector<1x1x10xf32>,
    return
  }
  func.func @transform_0(%arg0: i32) -> (i32, i32, i32) {
    %c0_i32 = arith.constant 0 : i32
    %c0_i32_0 = arith.constant 0 : i32
    %c0_i32_1 = arith.constant 0 : i32
    return %arg0, %c0_i32, %c0_i32_0 : i32, i32, i32
  }
  func.func @transform_1(%arg0: i32) -> (i32, i32) {
    %c0_i32 = arith.constant 0 : i32
    %c0_i32_0 = arith.constant 0 : i32
    %c0_i32_1 = arith.constant 0 : i32
    return %c0_i32, %c0_i32_0 : i32, i32
  }
  func.func @transform_2(%arg0: i32) -> (i32, i32) {
    %c0_i32 = arith.constant 0 : i32
    %c0_i32_0 = arith.constant 0 : i32
    %c0_i32_1 = arith.constant 0 : i32
    return %c0_i32, %c0_i32_0 : i32, i32
  }
  func.func @transform_3(%arg0: i32) -> (i32, i32, i32) {
    %c0_i32 = arith.constant 0 : i32
    %c0_i32_0 = arith.constant 0 : i32
    %c0_i32_1 = arith.constant 0 : i32
    %c0_i32_2 = arith.constant 0 : i32
    return %c0_i32, %c0_i32_0, %c0_i32_1 : i32, i32, i32
  }
  func.func @transform_4(%arg0: i32) -> (i32, i32) {
    %c0_i32 = arith.constant 0 : i32
    %c0_i32_0 = arith.constant 0 : i32
    %c0_i32_1 = arith.constant 0 : i32
    return %c0_i32, %c0_i32_0 : i32, i32
  }
  func.func @transform_5(%arg0: i32) -> (i32, i32) {
    %c0_i32 = arith.constant 0 : i32
    %c0_i32_0 = arith.constant 0 : i32
    %c0_i32_1 = arith.constant 0 : i32
    return %c0_i32, %c0_i32_0 : i32, i32
  }
  func.func @transform_6(%arg0: i32) -> (i32, i32) {
    %c0_i32 = arith.constant 0 : i32
    %c0_i32_0 = arith.constant 0 : i32
    %c0_i32_1 = arith.constant 0 : i32
    return %c0_i32, %c0_i32_0 : i32, i32
  }
  func.func @transform_7(%arg0: i32) -> (i32, i32, i32) {
    %c0_i32 = arith.constant 0 : i32
    %c0_i32_0 = arith.constant 0 : i32
    %c0_i32_1 = arith.constant 0 : i32
    return %arg0, %c0_i32, %c0_i32_0 : i32, i32, i32
  }
}

</mosaic_0001>

<llo_original>
// kernel: forward.1
$region0: #{forward.1}
  #allocation0 [shape = 'u32[]', space=smem, size = 0x4, offset = 0x4, fixed_abs, tag = 'smem constant byte address 0x4 - core index']
  #allocation1 [shape = 'u32[144,128]{1,0:T(1,128)}', space=vmem, size = 0x12000, scoped, tag = 'internal scratch']
  #allocation2 [shape = 'f32[64,810]{1,0:T(8,128)}', space=vmem, size = 0x38000, scoped, tag = 'scratch operand']
  %s0 = inlined_call_operand.vmem [shape: f32[2,4,930], index: 0, kind: input, shape index: {}]
  %s1 = inlined_call_operand.vmem [shape: f32[2,64], index: 1, kind: input, shape index: {}]
  %s2 = inlined_call_operand.vmem [shape: f32[2,1], index: 2, kind: input, shape index: {}]
  %s3 = inlined_call_operand.vmem [shape: f32[2,810,16], index: 3, kind: input, shape index: {}]
  %s4 = inlined_call_operand.vmem [shape: f32[1,16], index: 4, kind: input, shape index: {}]
  %s5 = inlined_call_operand.vmem [shape: f32[16,16], index: 5, kind: input, shape index: {}]
  %s6 = inlined_call_operand.vmem [shape: f32[1,16], index: 6, kind: input, shape index: {}]
  %s7 = inlined_call_operand.vmem [shape: f32[2,1,10], index: 7, kind: output, shape index: {}]
  %s8 = sld [smem:[#allocation0]]
  $region61: #{forward.1} parent=0
    _
  %s10 = ssub.s32 1, %s8
  %s11 = scalar_select 0, %s10, %s8
  loop: start=0, step=1, limit=4
  $region2: #{forward.1} parent=0 // loop_pre_header
    _
  $region3: #{forward.1} parent=0 // loop_header
    %s13 = sphi 0, %s17
    %p14 = scmp.ge.s32.totalorder %s13, 4
    %s23 = sphi 0, %s25
    %s26 = sphi 0, %s23
    %s27 = sphi 0, %s26
    %s43 = sphi 0, %s27
    %s47 = sphi 0, %s47
    %s49 = sphi 0, %s47
    %s50 = sphi 0, %s49
    %s64 = sphi 0, %s50
    %s68 = sphi 0, %s68
    %s70 = sphi 0, %s68
    %s71 = sphi 0, %s70
    %s85 = sphi 0, %s71
    %s89 = sphi 0, %s89
    %s91 = sphi 0, %s89
    %s92 = sphi 0, %s91
    %s106 = sphi 0, %s92
    %s110 = sphi 0, %s110
    %s112 = sphi 0, %s110
    %s113 = sphi 0, %s112
    %s127 = sphi 0, %s113
    %s131 = sphi 0, %s131
    %s133 = sphi 0, %s131
    %s134 = sphi 0, %s133
    %s148 = sphi 0, %s134
    %s152 = sphi 0, %s152
    %s154 = sphi 0, %s152
    %s155 = sphi 0, %s154
    %s169 = sphi 0, %s155
    %s175 = sphi 0, %s177
    %s178 = sphi 0, %s175
    %s179 = sphi 0, %s178
    %s195 = sphi 0, %s179
  $region4: #{forward.1} parent=0 // loop_header_branch
    %16 = sbr.rel (%p14) target = $region8
  $region5: #{forward.1} parent=0 // loop_body
    %s18 = ssub.s32 %s13, 1
    %s19 = ssub.s32 %s13, 2
    %s20 = sadd.s32 %s13, 1
    %s21 = ssub.s32 %s13, %s20
    %p22 = scmp.eq.s32.totalorder %s21, 0
    %s24 = sadd.s32 %s23, 1
    %s25 = scalar_select %p22, %s23, %s24
    %p28 = pneg %p22
    %p29 = scmp.eq.s32.totalorder %s13, 1
    %p30 = por %p28, %p29
    %p31 = scmp.ne.s32.totalorder %s23, %s26
    %p32 = scmp.eq.s32.totalorder %s13, 0
    %p33 = por %p31, %p32
    %p34 = scmp.ne.s32.totalorder %s23, %s26
    %p35 = scmp.eq.s32.totalorder %s18, 1
    %p36 = por %p34, %p35
    %p37 = scmp.ne.s32.totalorder %s26, %s27
    %p38 = scmp.eq.s32.totalorder %s18, 0
    %p39 = por %p37, %p38
    %p40 = scmp.ne.s32.totalorder %s26, %s27
    %p41 = scmp.eq.s32.totalorder %s19, 1
    %p42 = por %p40, %p41
    %p44 = scmp.ne.s32.totalorder %s27, %s43
    %p45 = scmp.eq.s32.totalorder %s19, 0
    %p46 = por %p44, %p45
    %s48 = sadd.s32 %s47, 1
    %p51 = scmp.eq.s32.totalorder %s13, 1
    %p52 = scmp.ne.s32.totalorder %s47, %s49
    %p53 = scmp.eq.s32.totalorder %s13, 0
    %p54 = por %p52, %p53
    %p55 = scmp.ne.s32.totalorder %s47, %s49
    %p56 = scmp.eq.s32.totalorder %s18, 1
    %p57 = por %p55, %p56
    %p58 = scmp.ne.s32.totalorder %s49, %s50
    %p59 = scmp.eq.s32.totalorder %s18, 0
    %p60 = por %p58, %p59
    %p61 = scmp.ne.s32.totalorder %s49, %s50
    %p62 = scmp.eq.s32.totalorder %s19, 1
    %p63 = por %p61, %p62
    %p65 = scmp.ne.s32.totalorder %s50, %s64
    %p66 = scmp.eq.s32.totalorder %s19, 0
    %p67 = por %p65, %p66
    %s69 = sadd.s32 %s68, 1
    %p72 = scmp.eq.s32.totalorder %s13, 1
    %p73 = scmp.ne.s32.totalorder %s68, %s70
    %p74 = scmp.eq.s32.totalorder %s13, 0
    %p75 = por %p73, %p74
    %p76 = scmp.ne.s32.totalorder %s68, %s70
    %p77 = scmp.eq.s32.totalorder %s18, 1
    %p78 = por %p76, %p77
    %p79 = scmp.ne.s32.totalorder %s70, %s71
    %p80 = scmp.eq.s32.totalorder %s18, 0
    %p81 = por %p79, %p80
    %p82 = scmp.ne.s32.totalorder %s70, %s71
    %p83 = scmp.eq.s32.totalorder %s19, 1
    %p84 = por %p82, %p83
    %p86 = scmp.ne.s32.totalorder %s71, %s85
    %p87 = scmp.eq.s32.totalorder %s19, 0
    %p88 = por %p86, %p87
    %s90 = sadd.s32 %s89, 1
    %p93 = scmp.eq.s32.totalorder %s13, 1
    %p94 = scmp.ne.s32.totalorder %s89, %s91
    %p95 = scmp.eq.s32.totalorder %s13, 0
    %p96 = por %p94, %p95
    %p97 = scmp.ne.s32.totalorder %s89, %s91
    %p98 = scmp.eq.s32.totalorder %s18, 1
    %p99 = por %p97, %p98
    %p100 = scmp.ne.s32.totalorder %s91, %s92
    %p101 = scmp.eq.s32.totalorder %s18, 0
    %p102 = por %p100, %p101
    %p103 = scmp.ne.s32.totalorder %s91, %s92
    %p104 = scmp.eq.s32.totalorder %s19, 1
    %p105 = por %p103, %p104
    %p107 = scmp.ne.s32.totalorder %s92, %s106
    %p108 = scmp.eq.s32.totalorder %s19, 0
    %p109 = por %p107, %p108
    %s111 = sadd.s32 %s110, 1
    %p114 = scmp.eq.s32.totalorder %s13, 1
    %p115 = scmp.ne.s32.totalorder %s110, %s112
    %p116 = scmp.eq.s32.totalorder %s13, 0
    %p117 = por %p115, %p116
    %p118 = scmp.ne.s32.totalorder %s110, %s112
    %p119 = scmp.eq.s32.totalorder %s18, 1
    %p120 = por %p118, %p119
    %p121 = scmp.ne.s32.totalorder %s112, %s113
    %p122 = scmp.eq.s32.totalorder %s18, 0
    %p123 = por %p121, %p122
    %p124 = scmp.ne.s32.totalorder %s112, %s113
    %p125 = scmp.eq.s32.totalorder %s19, 1
    %p126 = por %p124, %p125
    %p128 = scmp.ne.s32.totalorder %s113, %s127
    %p129 = scmp.eq.s32.totalorder %s19, 0
    %p130 = por %p128, %p129
    %s132 = sadd.s32 %s131, 1
    %p135 = scmp.eq.s32.totalorder %s13, 1
    %p136 = scmp.ne.s32.totalorder %s131, %s133
    %p137 = scmp.eq.s32.totalorder %s13, 0
    %p138 = por %p136, %p137
    %p139 = scmp.ne.s32.totalorder %s131, %s133
    %p140 = scmp.eq.s32.totalorder %s18, 1
    %p141 = por %p139, %p140
    %p142 = scmp.ne.s32.totalorder %s133, %s134
    %p143 = scmp.eq.s32.totalorder %s18, 0
    %p144 = por %p142, %p143
    %p145 = scmp.ne.s32.totalorder %s133, %s134
    %p146 = scmp.eq.s32.totalorder %s19, 1
    %p147 = por %p145, %p146
    %p149 = scmp.ne.s32.totalorder %s134, %s148
    %p150 = scmp.eq.s32.totalorder %s19, 0
    %p151 = por %p149, %p150
    %s153 = sadd.s32 %s152, 1
    %p156 = scmp.eq.s32.totalorder %s13, 1
    %p157 = scmp.ne.s32.totalorder %s152, %s154
    %p158 = scmp.eq.s32.totalorder %s13, 0
    %p159 = por %p157, %p158
    %p160 = scmp.ne.s32.totalorder %s152, %s154
    %p161 = scmp.eq.s32.totalorder %s18, 1
    %p162 = por %p160, %p161
    %p163 = scmp.ne.s32.totalorder %s154, %s155
    %p164 = scmp.eq.s32.totalorder %s18, 0
    %p165 = por %p163, %p164
    %p166 = scmp.ne.s32.totalorder %s154, %s155
    %p167 = scmp.eq.s32.totalorder %s19, 1
    %p168 = por %p166, %p167
    %p170 = scmp.ne.s32.totalorder %s155, %s169
    %p171 = scmp.eq.s32.totalorder %s19, 0
    %p172 = por %p170, %p171
    %s173 = ssub.s32 %s13, %s20
    %p174 = scmp.eq.s32.totalorder %s173, 0
    %s176 = sadd.s32 %s175, 1
    %s177 = scalar_select %p174, %s175, %s176
    %p180 = pneg %p174
    %p181 = scmp.eq.s32.totalorder %s13, 1
    %p182 = por %p180, %p181
    %p183 = scmp.ne.s32.totalorder %s175, %s178
    %p184 = scmp.eq.s32.totalorder %s13, 0
    %p185 = por %p183, %p184
    %p186 = scmp.ne.s32.totalorder %s175, %s178
    %p187 = scmp.eq.s32.totalorder %s18, 1
    %p188 = por %p186, %p187
    %p189 = scmp.ne.s32.totalorder %s178, %s179
    %p190 = scmp.eq.s32.totalorder %s18, 0
    %p191 = por %p189, %p190
    %p192 = scmp.ne.s32.totalorder %s178, %s179
    %p193 = scmp.eq.s32.totalorder %s19, 1
    %p194 = por %p192, %p193
    %p196 = scmp.ne.s32.totalorder %s179, %s195
    %p197 = scmp.eq.s32.totalorder %s19, 0
    %p198 = por %p196, %p197
    %p199 = scmp.le.s32.totalorder 1, %s13
    %p200 = scmp.lt.s32.totalorder %s13, 3
    %p201 = pnand %p199, %p200
    %p202 = pneg %p201
    // Predicated region
    $region9: #{forward.1} parent=5 // pred_check
      _
    $region10: #{forward.1} parent=5 // pred_check_branch
      %204 = sbr.rel (%p201) target = $region12
    $region11: #{forward.1} parent=5 // pred_region
      %s205 = ssub.s32 %s13, 1
      // Predicated region
      $region13: #{forward.1} parent=11 // pred_check
        %p206 = pneg %p60
      $region14: #{forward.1} parent=11 // pred_check_branch
        %208 = sbr.rel (%p206) target = $region16
      $region15: #{forward.1} parent=11 // pred_region
        _
      $region16: #{forward.1} parent=11 // pred_fallthru
        _
      // Predicated region
      $region17: #{forward.1} parent=11 // pred_check
        %p209 = pneg %p81
      $region18: #{forward.1} parent=11 // pred_check_branch
        %211 = sbr.rel (%p209) target = $region20
      $region19: #{forward.1} parent=11 // pred_region
        _
      $region20: #{forward.1} parent=11 // pred_fallthru
        _
      // Predicated region
      $region21: #{forward.1} parent=11 // pred_check
        %p212 = pneg %p102
      $region22: #{forward.1} parent=11 // pred_check_branch
        %214 = sbr.rel (%p212) target = $region24
      $region23: #{forward.1} parent=11 // pred_region
        _
      $region24: #{forward.1} parent=11 // pred_fallthru
        _
      // Predicated region
      $region25: #{forward.1} parent=11 // pred_check
        %p215 = pneg %p123
      $region26: #{forward.1} parent=11 // pred_check_branch
        %217 = sbr.rel (%p215) target = $region28
      $region27: #{forward.1} parent=11 // pred_region
        _
      $region28: #{forward.1} parent=11 // pred_fallthru
        _
      // Predicated region
      $region29: #{forward.1} parent=11 // pred_check
        %p218 = pneg %p144
      $region30: #{forward.1} parent=11 // pred_check_branch
        %220 = sbr.rel (%p218) target = $region32
      $region31: #{forward.1} parent=11 // pred_region
        _
      $region32: #{forward.1} parent=11 // pred_fallthru
        _
      // Predicated region
      $region33: #{forward.1} parent=11 // pred_check
        %p221 = pneg %p165
      $region34: #{forward.1} parent=11 // pred_check_branch
        %223 = sbr.rel (%p221) target = $region36
      $region35: #{forward.1} parent=11 // pred_region
        _
      $region36: #{forward.1} parent=11 // pred_fallthru
        _
    $region12: #{forward.1} parent=5 // pred_fallthru
      _
    %p224 = scmp.lt.s32.totalorder %s13, 2
    // Predicated region
    $region37: #{forward.1} parent=5 // pred_check
      %p225 = pneg %p224
    $region38: #{forward.1} parent=5 // pred_check_branch
      %227 = sbr.rel (%p225) target = $region40
    $region39: #{forward.1} parent=5 // pred_region
      // Predicated region
      $region41: #{forward.1} parent=39 // pred_check
        %p228 = pneg %p33
      $region42: #{forward.1} parent=39 // pred_check_branch
        %230 = sbr.rel (%p228) target = $region44
      $region43: #{forward.1} parent=39 // pred_region
        %p231 = scmp.lt.s32.totalorder %s13, 1
        %s232 = scalar_select %p231, %s13, 1
        %s233 = smul.addr %s232, 8
        %s234 = smul.addr %s233, 4
        %s235 = scalar_lea.vmem %s0, %s234
      $region44: #{forward.1} parent=39 // pred_fallthru
        _
    $region40: #{forward.1} parent=5 // pred_fallthru
      _
    %p236 = scmp.le.s32.totalorder 1, %s13
    %p237 = scmp.lt.s32.totalorder %s13, 3
    %p238 = pnand %p236, %p237
    %p239 = pneg %p238
    // Predicated region
    $region45: #{forward.1} parent=5 // pred_check
      _
    $region46: #{forward.1} parent=5 // pred_check_branch
      %241 = sbr.rel (%p238) target = $region48
    $region47: #{forward.1} parent=5 // pred_region
      %s242 = ssub.s32 %s13, 1
      %p243 = scmp.lt.s32.totalorder %s18, 1
      %s244 = scalar_select %p243, %s18, 1
      %s245 = smul.addr %s244, 8
      %s246 = smul.addr %s245, 4
      %s247 = scalar_lea.vmem %s0, %s246
      %p248 = pneg %p39
      %p249 = pneg %p36
      %p250 = pneg %p60
      %p251 = pneg %p57
      %p252 = pneg %p81
      %p253 = pneg %p78
      %p254 = pneg %p102
      %p255 = pneg %p99
      %p256 = pneg %p123
      %p257 = pneg %p120
      %p258 = pneg %p144
      %p259 = pneg %p141
      %p260 = pneg %p165
      %p261 = pneg %p162
      %p262 = pneg %p191
      %p263 = pneg %p188
      %p264 = scmp.lt.s32.totalorder %s18, 1
      %s265 = scalar_select %p264, %s18, 1
      %s266 = scalar_lea.vmem %s7, %s265
      %p267 = scmp.lt.s32.totalorder %s18, 1
      %s268 = scalar_select %p267, %s18, 1
      %s269 = smul.addr %s268, 8
      %s270 = smul.addr %s269, 4
      %s271 = scalar_lea.vmem %s0, %s270
      %p272 = scmp.lt.s32.totalorder %s18, 1
      %s273 = scalar_select %p272, %s18, 1
      %s274 = scalar_lea.vmem %s7, %s273
      %v275 = vld [vmem:[%s271] sm:$0xff]
      %v276 = vld [vmem:[%s271 + $0x8] sm:$0xff]
      %v277 = vld [vmem:[%s271 + $0x10] sm:$0xff]
      %v278 = vld [vmem:[%s271 + $0x18] sm:$0xf]
      %v282 = vcombine.high %v275, %v275
      %v283 = vcombine.high %v276, %v276
      %v284 = vcombine.high %v277, %v277
      %288 = vst [vmem:[#allocation2] sm:$0xf] %v275
      %289 = vst [vmem:[#allocation2 + $0x8] sm:$0xf] %v282
      %290 = vst [vmem:[#allocation2 + $0x10] sm:$0xf] %v276
      %291 = vst [vmem:[#allocation2 + $0x18] sm:$0xf] %v283
      %292 = vst [vmem:[#allocation2 + $0x20] sm:$0xf] %v277
      %293 = vst [vmem:[#allocation2 + $0x28] sm:$0xf] %v284
      %vm294 = vcmask 338944
      %295 = vst.msk [vmem:[#allocation2 + $0x30] sm:$0xf] %vm294, %v278
      %v296 = vld [vmem:[%s271] sm:$0xff]
      %v297 = vld [vmem:[%s271 + $0x8] sm:$0xff]
      %v298 = vld [vmem:[%s271 + $0x10] sm:$0xff]
      %v299 = vld [vmem:[%s271 + $0x18] sm:$0xf]
      %v304 = vcombine.low %v296, %v296
      %v305 = vcombine.low %v297, %v297
      %v306 = vcombine.low %v298, %v298
      %v307 = vcombine.low %v299, %v299
      %308 = vrot.lane.b32.xlu0 %v304, 127
      %v309 = vpop.permute.xlu0 %308
      %310 = vrot.lane.b32.xlu0 %v296, 127
      %v311 = vpop.permute.xlu0 %310
      %312 = vrot.lane.b32.xlu0 %v305, 127
      %v313 = vpop.permute.xlu0 %312
      %314 = vrot.lane.b32.xlu0 %v297, 127
      %v315 = vpop.permute.xlu0 %314
      %316 = vrot.lane.b32.xlu0 %v306, 127
      %v317 = vpop.permute.xlu0 %316
      %318 = vrot.lane.b32.xlu0 %v298, 127
      %v319 = vpop.permute.xlu0 %318
      %320 = vrot.lane.b32.xlu0 %v307, 127
      %v321 = vpop.permute.xlu0 %320
      %vm322 = vcmask 1039360
      %v323 = vsel %vm322, %v309, %v311
      %v324 = vsel %vm322, %v311, %v313
      %v325 = vsel %vm322, %v313, %v315
      %v326 = vsel %vm322, %v315, %v317
      %v327 = vsel %vm322, %v317, %v319
      %v328 = vsel %vm322, %v319, %v321
      %336 = vst [vmem:[#allocation2] sm:$0xf0] %v323
      %337 = vst [vmem:[#allocation2 + $0x8] sm:$0xf0] %v324
      %338 = vst [vmem:[#allocation2 + $0x10] sm:$0xf0] %v325
      %339 = vst [vmem:[#allocation2 + $0x18] sm:$0xf0] %v326
      %340 = vst [vmem:[#allocation2 + $0x20] sm:$0xf0] %v327
      %341 = vst [vmem:[#allocation2 + $0x28] sm:$0xf0] %v328
      %vm342 = vcmask 343044
      %343 = vst.msk [vmem:[#allocation2 + $0x30] sm:$0xf0] %vm342, %v321
      %v344 = vld [vmem:[%s271] sm:$0xff]
      %v345 = vld [vmem:[%s271 + $0x8] sm:$0xff]
      %v346 = vld [vmem:[%s271 + $0x10] sm:$0xff]
      %v347 = vld [vmem:[%s271 + $0x18] sm:$0xf]
      %v352 = vcombine.high %v344, %v344
      %v353 = vcombine.high %v345, %v345
      %v354 = vcombine.high %v346, %v346
      %355 = vrot.lane.b32.xlu0 %v344, 126
      %v356 = vpop.permute.xlu0 %355
      %357 = vrot.lane.b32.xlu0 %v352, 126
      %v358 = vpop.permute.xlu0 %357
      %359 = vrot.lane.b32.xlu0 %v345, 126
      %v360 = vpop.permute.xlu0 %359
      %361 = vrot.lane.b32.xlu0 %v353, 126
      %v362 = vpop.permute.xlu0 %361
      %363 = vrot.lane.b32.xlu0 %v346, 126
      %v364 = vpop.permute.xlu0 %363
      %365 = vrot.lane.b32.xlu0 %v354, 126
      %v366 = vpop.permute.xlu0 %365
      %367 = vrot.lane.b32.xlu0 %v347, 126
      %v368 = vpop.permute.xlu0 %367
      %vm369 = vcmask 1031168
      %v370 = vsel %vm369, %v356, %v358
      %v371 = vsel %vm369, %v358, %v360
      %v372 = vsel %vm369, %v360, %v362
      %v373 = vsel %vm369, %v362, %v364
      %v374 = vsel %vm369, %v364, %v366
      %v375 = vsel %vm369, %v366, %v368
      %383 = vst [vmem:[#allocation2 + $0x38] sm:$0xf] %v370
      %384 = vst [vmem:[#allocation2 + $0x40] sm:$0xf] %v371
      %385 = vst [vmem:[#allocation2 + $0x48] sm:$0xf] %v372
      %386 = vst [vmem:[#allocation2 + $0x50] sm:$0xf] %v373
      %387 = vst [vmem:[#allocation2 + $0x58] sm:$0xf] %v374
      %388 = vst [vmem:[#allocation2 + $0x60] sm:$0xf] %v375
      %389 = vst.msk [vmem:[#allocation2 + $0x68] sm:$0xf] %vm294, %v368
      %v390 = vld [vmem:[%s271] sm:$0xff]
      %v391 = vld [vmem:[%s271 + $0x8] sm:$0xff]
      %v392 = vld [vmem:[%s271 + $0x10] sm:$0xff]
      %v393 = vld [vmem:[%s271 + $0x18] sm:$0xf]
      %v398 = vcombine.low %v390, %v390
      %v399 = vcombine.low %v391, %v391
      %v400 = vcombine.low %v392, %v392
      %v401 = vcombine.low %v393, %v393
      %402 = vrot.lane.b32.xlu0 %v398, 125
      %v403 = vpop.permute.xlu0 %402
      %404 = vrot.lane.b32.xlu0 %v390, 125
      %v405 = vpop.permute.xlu0 %404
      %406 = vrot.lane.b32.xlu0 %v399, 125
      %v407 = vpop.permute.xlu0 %406
      %408 = vrot.lane.b32.xlu0 %v391, 125
      %v409 = vpop.permute.xlu0 %408
      %410 = vrot.lane.b32.xlu0 %v400, 125
      %v411 = vpop.permute.xlu0 %410
      %412 = vrot.lane.b32.xlu0 %v392, 125
      %v413 = vpop.permute.xlu0 %412
      %414 = vrot.lane.b32.xlu0 %v401, 125
      %v415 = vpop.permute.xlu0 %414
      %vm416 = vcmask 1022976
      %v417 = vsel %vm416, %v403, %v405
      %v418 = vsel %vm416, %v405, %v407
      %v419 = vsel %vm416, %v407, %v409
      %v420 = vsel %vm416, %v409, %v411
      %v421 = vsel %vm416, %v411, %v413
      %v422 = vsel %vm416, %v413, %v415
      %430 = vst [vmem:[#allocation2 + $0x38] sm:$0xf0] %v417
      %431 = vst [vmem:[#allocation2 + $0x40] sm:$0xf0] %v418
      %432 = vst [vmem:[#allocation2 + $0x48] sm:$0xf0] %v419
      %433 = vst [vmem:[#allocation2 + $0x50] sm:$0xf0] %v420
      %434 = vst [vmem:[#allocation2 + $0x58] sm:$0xf0] %v421
      %435 = vst [vmem:[#allocation2 + $0x60] sm:$0xf0] %v422
      %436 = vst.msk [vmem:[#allocation2 + $0x68] sm:$0xf0] %vm342, %v415
      %v437 = vld [vmem:[%s271] sm:$0xff]
      %v438 = vld [vmem:[%s271 + $0x8] sm:$0xff]
      %v439 = vld [vmem:[%s271 + $0x10] sm:$0xff]
      %v440 = vld [vmem:[%s271 + $0x18] sm:$0xf]
      %v445 = vcombine.high %v437, %v437
      %v446 = vcombine.high %v438, %v438
      %v447 = vcombine.high %v439, %v439
      %448 = vrot.lane.b32.xlu0 %v437, 98
      %v449 = vpop.permute.xlu0 %448
      %450 = vrot.lane.b32.xlu0 %v445, 98
      %v451 = vpop.permute.xlu0 %450
      %452 = vrot.lane.b32.xlu0 %v438, 98
      %v453 = vpop.permute.xlu0 %452
      %454 = vrot.lane.b32.xlu0 %v446, 98
      %v455 = vpop.permute.xlu0 %454
      %456 = vrot.lane.b32.xlu0 %v439, 98
      %v457 = vpop.permute.xlu0 %456
      %458 = vrot.lane.b32.xlu0 %v447, 98
      %v459 = vpop.permute.xlu0 %458
      %460 = vrot.lane.b32.xlu0 %v440, 98
      %v461 = vpop.permute.xlu0 %460
      %vm462 = vcmask 801792
      %v463 = vsel %vm462, %v449, %v451
      %v464 = vsel %vm462, %v451, %v453
      %v465 = vsel %vm462, %v453, %v455
      %v466 = vsel %vm462, %v455, %v457
      %v467 = vsel %vm462, %v457, %v459
      %v468 = vsel %vm462, %v459, %v461
      %476 = vst [vmem:[#allocation2 + $0x70] sm:$0xf] %v463
      %477 = vst [vmem:[#allocation2 + $0x78] sm:$0xf] %v464
      %478 = vst [vmem:[#allocation2 + $0x80] sm:$0xf] %v465
      %479 = vst [vmem:[#allocation2 + $0x88] sm:$0xf] %v466
      %480 = vst [vmem:[#allocation2 + $0x90] sm:$0xf] %v467
      %481 = vst [vmem:[#allocation2 + $0x98] sm:$0xf] %v468
      %482 = vst.msk [vmem:[#allocation2 + $0xa0] sm:$0xf] %vm294, %v461
      %v483 = vld [vmem:[%s271] sm:$0xff]
      %v484 = vld [vmem:[%s271 + $0x8] sm:$0xff]
      %v485 = vld [vmem:[%s271 + $0x10] sm:$0xff]
      %v486 = vld [vmem:[%s271 + $0x18] sm:$0xf]
      %v491 = vcombine.low %v483, %v483
      %v492 = vcombine.low %v484, %v484
      %v493 = vcombine.low %v485, %v485
      %v494 = vcombine.low %v486, %v486
      %495 = vrot.lane.b32.xlu0 %v491, 97
      %v496 = vpop.permute.xlu0 %495
      %497 = vrot.lane.b32.xlu0 %v483, 97
      %v498 = vpop.permute.xlu0 %497
      %499 = vrot.lane.b32.xlu0 %v492, 97
      %v500 = vpop.permute.xlu0 %499
      %501 = vrot.lane.b32.xlu0 %v484, 97
      %v502 = vpop.permute.xlu0 %501
      %503 = vrot.lane.b32.xlu0 %v493, 97
      %v504 = vpop.permute.xlu0 %503
      %505 = vrot.lane.b32.xlu0 %v485, 97
      %v506 = vpop.permute.xlu0 %505
      %507 = vrot.lane.b32.xlu0 %v494, 97
      %v508 = vpop.permute.xlu0 %507
      %vm509 = vcmask 793600
      %v510 = vsel %vm509, %v496, %v498
      %v511 = vsel %vm509, %v498, %v500
      %v512 = vsel %vm509, %v500, %v502
      %v513 = vsel %vm509, %v502, %v504
      %v514 = vsel %vm509, %v504, %v506
      %v515 = vsel %vm509, %v506, %v508
      %523 = vst [vmem:[#allocation2 + $0x70] sm:$0xf0] %v510
      %524 = vst [vmem:[#allocation2 + $0x78] sm:$0xf0] %v511
      %525 = vst [vmem:[#allocation2 + $0x80] sm:$0xf0] %v512
      %526 = vst [vmem:[#allocation2 + $0x88] sm:$0xf0] %v513
      %527 = vst [vmem:[#allocation2 + $0x90] sm:$0xf0] %v514
      %528 = vst [vmem:[#allocation2 + $0x98] sm:$0xf0] %v515
      %529 = vst.msk [vmem:[#allocation2 + $0xa0] sm:$0xf0] %vm342, %v508
      %v530 = vld [vmem:[%s271] sm:$0xff]
      %v531 = vld [vmem:[%s271 + $0x8] sm:$0xff]
      %v532 = vld [vmem:[%s271 + $0x10] sm:$0xff]
      %v533 = vld [vmem:[%s271 + $0x18] sm:$0xf]
      %v538 = vcombine.high %v530, %v530
      %v539 = vcombine.high %v531, %v531
      %v540 = vcombine.high %v532, %v532
      %541 = vrot.lane.b32.xlu0 %v530, 96
      %v542 = vpop.permute.xlu0 %541
      %543 = vrot.lane.b32.xlu0 %v538, 96
      %v544 = vpop.permute.xlu0 %543
      %545 = vrot.lane.b32.xlu0 %v531, 96
      %v546 = vpop.permute.xlu0 %545
      %547 = vrot.lane.b32.xlu0 %v539, 96
      %v548 = vpop.permute.xlu0 %547
      %549 = vrot.lane.b32.xlu0 %v532, 96
      %v550 = vpop.permute.xlu0 %549
      %551 = vrot.lane.b32.xlu0 %v540, 96
      %v552 = vpop.permute.xlu0 %551
      %553 = vrot.lane.b32.xlu0 %v533, 96
      %v554 = vpop.permute.xlu0 %553
      %vm555 = vcmask 785408
      %v556 = vsel %vm555, %v542, %v544
      %v557 = vsel %vm555, %v544, %v546
      %v558 = vsel %vm555, %v546, %v548
      %v559 = vsel %vm555, %v548, %v550
      %v560 = vsel %vm555, %v550, %v552
      %v561 = vsel %vm555, %v552, %v554
      %569 = vst [vmem:[#allocation2 + $0xa8] sm:$0xf] %v556
      %570 = vst [vmem:[#allocation2 + $0xb0] sm:$0xf] %v557
      %571 = vst [vmem:[#allocation2 + $0xb8] sm:$0xf] %v558
      %572 = vst [vmem:[#allocation2 + $0xc0] sm:$0xf] %v559
      %573 = vst [vmem:[#allocation2 + $0xc8] sm:$0xf] %v560
      %574 = vst [vmem:[#allocation2 + $0xd0] sm:$0xf] %v561
      %575 = vst.msk [vmem:[#allocation2 + $0xd8] sm:$0xf] %vm294, %v554
      %v576 = vld [vmem:[%s271] sm:$0xff]
      %v577 = vld [vmem:[%s271 + $0x8] sm:$0xff]
      %v578 = vld [vmem:[%s271 + $0x10] sm:$0xff]
      %v579 = vld [vmem:[%s271 + $0x18] sm:$0xf]
      %v584 = vcombine.low %v576, %v576
      %v585 = vcombine.low %v577, %v577
      %v586 = vcombine.low %v578, %v578
      %v587 = vcombine.low %v579, %v579
      %588 = vrot.lane.b32.xlu0 %v584, 95
      %v589 = vpop.permute.xlu0 %588
      %590 = vrot.lane.b32.xlu0 %v576, 95
      %v591 = vpop.permute.xlu0 %590
      %592 = vrot.lane.b32.xlu0 %v585, 95
      %v593 = vpop.permute.xlu0 %592
      %594 = vrot.lane.b32.xlu0 %v577, 95
      %v595 = vpop.permute.xlu0 %594
      %596 = vrot.lane.b32.xlu0 %v586, 95
      %v597 = vpop.permute.xlu0 %596
      %598 = vrot.lane.b32.xlu0 %v578, 95
      %v599 = vpop.permute.xlu0 %598
      %600 = vrot.lane.b32.xlu0 %v587, 95
      %v601 = vpop.permute.xlu0 %600
      %vm602 = vcmask 777216
      %v603 = vsel %vm602, %v589, %v591
      %v604 = vsel %vm602, %v591, %v593
      %v605 = vsel %vm602, %v593, %v595
      %v606 = vsel %vm602, %v595, %v597
      %v607 = vsel %vm602, %v597, %v599
      %v608 = vsel %vm602, %v599, %v601
      %616 = vst [vmem:[#allocation2 + $0xa8] sm:$0xf0] %v603
      %617 = vst [vmem:[#allocation2 + $0xb0] sm:$0xf0] %v604
      %618 = vst [vmem:[#allocation2 + $0xb8] sm:$0xf0] %v605
      %619 = vst [vmem:[#allocation2 + $0xc0] sm:$0xf0] %v606
      %620 = vst [vmem:[#allocation2 + $0xc8] sm:$0xf0] %v607
      %621 = vst [vmem:[#allocation2 + $0xd0] sm:$0xf0] %v608
      %622 = vst.msk [vmem:[#allocation2 + $0xd8] sm:$0xf0] %vm342, %v601
      %v623 = vld [vmem:[%s271] sm:$0xff]
      %v624 = vld [vmem:[%s271 + $0x8] sm:$0xff]
      %v625 = vld [vmem:[%s271 + $0x10] sm:$0xff]
      %v626 = vld [vmem:[%s271 + $0x18] sm:$0xf]
      %v631 = vcombine.high %v623, %v623
      %v632 = vcombine.high %v624, %v624
      %v633 = vcombine.high %v625, %v625
      %634 = vrot.lane.b32.xlu0 %v623, 68
      %v635 = vpop.permute.xlu0 %634
      %636 = vrot.lane.b32.xlu0 %v631, 68
      %v637 = vpop.permute.xlu0 %636
      %638 = vrot.lane.b32.xlu0 %v624, 68
      %v639 = vpop.permute.xlu0 %638
      %640 = vrot.lane.b32.xlu0 %v632, 68
      %v641 = vpop.permute.xlu0 %640
      %642 = vrot.lane.b32.xlu0 %v625, 68
      %v643 = vpop.permute.xlu0 %642
      %644 = vrot.lane.b32.xlu0 %v633, 68
      %v645 = vpop.permute.xlu0 %644
      %646 = vrot.lane.b32.xlu0 %v626, 68
      %v647 = vpop.permute.xlu0 %646
      %vm648 = vcmask 556032
      %v649 = vsel %vm648, %v635, %v637
      %v650 = vsel %vm648, %v637, %v639
      %v651 = vsel %vm648, %v639, %v641
      %v652 = vsel %vm648, %v641, %v643
      %v653 = vsel %vm648, %v643, %v645
      %v654 = vsel %vm648, %v645, %v647
      %662 = vst [vmem:[#allocation2 + $0xe0] sm:$0xf] %v649
      %663 = vst [vmem:[#allocation2 + $0xe8] sm:$0xf] %v650
      %664 = vst [vmem:[#allocation2 + $0xf0] sm:$0xf] %v651
      %665 = vst [vmem:[#allocation2 + $0xf8] sm:$0xf] %v652
      %666 = vst [vmem:[#allocation2 + $0x100] sm:$0xf] %v653
      %667 = vst [vmem:[#allocation2 + $0x108] sm:$0xf] %v654
      %668 = vst.msk [vmem:[#allocation2 + $0x110] sm:$0xf] %vm294, %v647
      %v669 = vld [vmem:[%s271] sm:$0xff]
      %v670 = vld [vmem:[%s271 + $0x8] sm:$0xff]
      %v671 = vld [vmem:[%s271 + $0x10] sm:$0xff]
      %v672 = vld [vmem:[%s271 + $0x18] sm:$0xf]
      %v677 = vcombine.low %v669, %v669
      %v678 = vcombine.low %v670, %v670
      %v679 = vcombine.low %v671, %v671
      %v680 = vcombine.low %v672, %v672
      %681 = vrot.lane.b32.xlu0 %v677, 67
      %v682 = vpop.permute.xlu0 %681
      %683 = vrot.lane.b32.xlu0 %v669, 67
      %v684 = vpop.permute.xlu0 %683
      %685 = vrot.lane.b32.xlu0 %v678, 67
      %v686 = vpop.permute.xlu0 %685
      %687 = vrot.lane.b32.xlu0 %v670, 67
      %v688 = vpop.permute.xlu0 %687
      %689 = vrot.lane.b32.xlu0 %v679, 67
      %v690 = vpop.permute.xlu0 %689
      %691 = vrot.lane.b32.xlu0 %v671, 67
      %v692 = vpop.permute.xlu0 %691
      %693 = vrot.lane.b32.xlu0 %v680, 67
      %v694 = vpop.permute.xlu0 %693
      %vm695 = vcmask 547840
      %v696 = vsel %vm695, %v682, %v684
      %v697 = vsel %vm695, %v684, %v686
      %v698 = vsel %vm695, %v686, %v688
      %v699 = vsel %vm695, %v688, %v690
      %v700 = vsel %vm695, %v690, %v692
      %v701 = vsel %vm695, %v692, %v694
      %709 = vst [vmem:[#allocation2 + $0xe0] sm:$0xf0] %v696
      %710 = vst [vmem:[#allocation2 + $0xe8] sm:$0xf0] %v697
      %711 = vst [vmem:[#allocation2 + $0xf0] sm:$0xf0] %v698
      %712 = vst [vmem:[#allocation2 + $0xf8] sm:$0xf0] %v699
      %713 = vst [vmem:[#allocation2 + $0x100] sm:$0xf0] %v700
      %714 = vst [vmem:[#allocation2 + $0x108] sm:$0xf0] %v701
      %715 = vst.msk [vmem:[#allocation2 + $0x110] sm:$0xf0] %vm342, %v694
      %v716 = vld [vmem:[%s271] sm:$0xff]
      %v717 = vld [vmem:[%s271 + $0x8] sm:$0xff]
      %v718 = vld [vmem:[%s271 + $0x10] sm:$0xff]
      %v719 = vld [vmem:[%s271 + $0x18] sm:$0xf]
      %v724 = vcombine.high %v716, %v716
      %v725 = vcombine.high %v717, %v717
      %v726 = vcombine.high %v718, %v718
      %727 = vrot.lane.b32.xlu0 %v716, 66
      %v728 = vpop.permute.xlu0 %727
      %729 = vrot.lane.b32.xlu0 %v724, 66
      %v730 = vpop.permute.xlu0 %729
      %731 = vrot.lane.b32.xlu0 %v717, 66
      %v732 = vpop.permute.xlu0 %731
      %733 = vrot.lane.b32.xlu0 %v725, 66
      %v734 = vpop.permute.xlu0 %733
      %735 = vrot.lane.b32.xlu0 %v718, 66
      %v736 = vpop.permute.xlu0 %735
      %737 = vrot.lane.b32.xlu0 %v726, 66
      %v738 = vpop.permute.xlu0 %737
      %739 = vrot.lane.b32.xlu0 %v719, 66
      %v740 = vpop.permute.xlu0 %739
      %vm741 = vcmask 539648
      %v742 = vsel %vm741, %v728, %v730
      %v743 = vsel %vm741, %v730, %v732
      %v744 = vsel %vm741, %v732, %v734
      %v745 = vsel %vm741, %v734, %v736
      %v746 = vsel %vm741, %v736, %v738
      %v747 = vsel %vm741, %v738, %v740
      %755 = vst [vmem:[#allocation2 + $0x118] sm:$0xf] %v742
      %756 = vst [vmem:[#allocation2 + $0x120] sm:$0xf] %v743
      %757 = vst [vmem:[#allocation2 + $0x128] sm:$0xf] %v744
      %758 = vst [vmem:[#allocation2 + $0x130] sm:$0xf] %v745
      %759 = vst [vmem:[#allocation2 + $0x138] sm:$0xf] %v746
      %760 = vst [vmem:[#allocation2 + $0x140] sm:$0xf] %v747
      %761 = vst.msk [vmem:[#allocation2 + $0x148] sm:$0xf] %vm294, %v740
      %v762 = vld [vmem:[%s271] sm:$0xff]
      %v763 = vld [vmem:[%s271 + $0x8] sm:$0xff]
      %v764 = vld [vmem:[%s271 + $0x10] sm:$0xff]
      %v765 = vld [vmem:[%s271 + $0x18] sm:$0xf]
      %v770 = vcombine.low %v762, %v762
      %v771 = vcombine.low %v763, %v763
      %v772 = vcombine.low %v764, %v764
      %v773 = vcombine.low %v765, %v765
      %774 = vrot.lane.b32.xlu0 %v770, 65
      %v775 = vpop.permute.xlu0 %774
      %776 = vrot.lane.b32.xlu0 %v762, 65
      %v777 = vpop.permute.xlu0 %776
      %778 = vrot.lane.b32.xlu0 %v771, 65
      %v779 = vpop.permute.xlu0 %778
      %780 = vrot.lane.b32.xlu0 %v763, 65
      %v781 = vpop.permute.xlu0 %780
      %782 = vrot.lane.b32.xlu0 %v772, 65
      %v783 = vpop.permute.xlu0 %782
      %784 = vrot.lane.b32.xlu0 %v764, 65
      %v785 = vpop.permute.xlu0 %784
      %786 = vrot.lane.b32.xlu0 %v773, 65
      %v787 = vpop.permute.xlu0 %786
      %vm788 = vcmask 531456
      %v789 = vsel %vm788, %v775, %v777
      %v790 = vsel %vm788, %v777, %v779
      %v791 = vsel %vm788, %v779, %v781
      %v792 = vsel %vm788, %v781, %v783
      %v793 = vsel %vm788, %v783, %v785
      %v794 = vsel %vm788, %v785, %v787
      %802 = vst [vmem:[#allocation2 + $0x118] sm:$0xf0] %v789
      %803 = vst [vmem:[#allocation2 + $0x120] sm:$0xf0] %v790
      %804 = vst [vmem:[#allocation2 + $0x128] sm:$0xf0] %v791
      %805 = vst [vmem:[#allocation2 + $0x130] sm:$0xf0] %v792
      %806 = vst [vmem:[#allocation2 + $0x138] sm:$0xf0] %v793
      %807 = vst [vmem:[#allocation2 + $0x140] sm:$0xf0] %v794
      %808 = vst.msk [vmem:[#allocation2 + $0x148] sm:$0xf0] %vm342, %v787
      %v809 = vld [vmem:[%s271] sm:$0xff]
      %v810 = vld [vmem:[%s271 + $0x8] sm:$0xff]
      %v811 = vld [vmem:[%s271 + $0x10] sm:$0xff]
      %v812 = vld [vmem:[%s271 + $0x18] sm:$0xff]
      %v817 = vcombine.high %v809, %v809
      %v818 = vcombine.high %v810, %v810
      %v819 = vcombine.high %v811, %v811
      %v820 = vcombine.high %v812, %v812
      %821 = vrot.lane.b32.xlu0 %v809, 38
      %v822 = vpop.permute.xlu0 %821
      %823 = vrot.lane.b32.xlu0 %v817, 38
      %v824 = vpop.permute.xlu0 %823
      %825 = vrot.lane.b32.xlu0 %v810, 38
      %v826 = vpop.permute.xlu0 %825
      %827 = vrot.lane.b32.xlu0 %v818, 38
      %v828 = vpop.permute.xlu0 %827
      %829 = vrot.lane.b32.xlu0 %v811, 38
      %v830 = vpop.permute.xlu0 %829
      %831 = vrot.lane.b32.xlu0 %v819, 38
      %v832 = vpop.permute.xlu0 %831
      %833 = vrot.lane.b32.xlu0 %v812, 38
      %v834 = vpop.permute.xlu0 %833
      %835 = vrot.lane.b32.xlu0 %v820, 38
      %v836 = vpop.permute.xlu0 %835
      %vm837 = vcmask 310272
      %v838 = vsel %vm837, %v822, %v824
      %v839 = vsel %vm837, %v824, %v826
      %v840 = vsel %vm837, %v826, %v828
      %v841 = vsel %vm837, %v828, %v830
      %v842 = vsel %vm837, %v830, %v832
      %v843 = vsel %vm837, %v832, %v834
      %v844 = vsel %vm837, %v834, %v836
      %852 = vst [vmem:[#allocation2 + $0x150] sm:$0xf] %v838
      %853 = vst [vmem:[#allocation2 + $0x158] sm:$0xf] %v839
      %854 = vst [vmem:[#allocation2 + $0x160] sm:$0xf] %v840
      %855 = vst [vmem:[#allocation2 + $0x168] sm:$0xf] %v841
      %856 = vst [vmem:[#allocation2 + $0x170] sm:$0xf] %v842
      %857 = vst [vmem:[#allocation2 + $0x178] sm:$0xf] %v843
      %858 = vst.msk [vmem:[#allocation2 + $0x180] sm:$0xf] %vm294, %v844
      %v859 = vld [vmem:[%s271] sm:$0xff]
      %v860 = vld [vmem:[%s271 + $0x8] sm:$0xff]
      %v861 = vld [vmem:[%s271 + $0x10] sm:$0xff]
      %v862 = vld [vmem:[%s271 + $0x18] sm:$0xff]
      %v867 = vcombine.low %v859, %v859
      %v868 = vcombine.low %v860, %v860
      %v869 = vcombine.low %v861, %v861
      %v870 = vcombine.low %v862, %v862
      %871 = vrot.lane.b32.xlu0 %v867, 37
      %v872 = vpop.permute.xlu0 %871
      %873 = vrot.lane.b32.xlu0 %v859, 37
      %v874 = vpop.permute.xlu0 %873
      %875 = vrot.lane.b32.xlu0 %v868, 37
      %v876 = vpop.permute.xlu0 %875
      %877 = vrot.lane.b32.xlu0 %v860, 37
      %v878 = vpop.permute.xlu0 %877
      %879 = vrot.lane.b32.xlu0 %v869, 37
      %v880 = vpop.permute.xlu0 %879
      %881 = vrot.lane.b32.xlu0 %v861, 37
      %v882 = vpop.permute.xlu0 %881
      %883 = vrot.lane.b32.xlu0 %v870, 37
      %v884 = vpop.permute.xlu0 %883
      %885 = vrot.lane.b32.xlu0 %v862, 37
      %v886 = vpop.permute.xlu0 %885
      %vm887 = vcmask 302080
      %v888 = vsel %vm887, %v872, %v874
      %v889 = vsel %vm887, %v874, %v876
      %v890 = vsel %vm887, %v876, %v878
      %v891 = vsel %vm887, %v878, %v880
      %v892 = vsel %vm887, %v880, %v882
      %v893 = vsel %vm887, %v882, %v884
      %v894 = vsel %vm887, %v884, %v886
      %902 = vst [vmem:[#allocation2 + $0x150] sm:$0xf0] %v888
      %903 = vst [vmem:[#allocation2 + $0x158] sm:$0xf0] %v889
      %904 = vst [vmem:[#allocation2 + $0x160] sm:$0xf0] %v890
      %905 = vst [vmem:[#allocation2 + $0x168] sm:$0xf0] %v891
      %906 = vst [vmem:[#allocation2 + $0x170] sm:$0xf0] %v892
      %907 = vst [vmem:[#allocation2 + $0x178] sm:$0xf0] %v893
      %908 = vst.msk [vmem:[#allocation2 + $0x180] sm:$0xf0] %vm342, %v894
      %v909 = vld [vmem:[%s271] sm:$0xff]
      %v910 = vld [vmem:[%s271 + $0x8] sm:$0xff]
      %v911 = vld [vmem:[%s271 + $0x10] sm:$0xff]
      %v912 = vld [vmem:[%s271 + $0x18] sm:$0xff]
      %v917 = vcombine.high %v909, %v909
      %v918 = vcombine.high %v910, %v910
      %v919 = vcombine.high %v911, %v911
      %v920 = vcombine.high %v912, %v912
      %921 = vrot.lane.b32.xlu0 %v909, 36
      %v922 = vpop.permute.xlu0 %921
      %923 = vrot.lane.b32.xlu0 %v917, 36
      %v924 = vpop.permute.xlu0 %923
      %925 = vrot.lane.b32.xlu0 %v910, 36
      %v926 = vpop.permute.xlu0 %925
      %927 = vrot.lane.b32.xlu0 %v918, 36
      %v928 = vpop.permute.xlu0 %927
      %929 = vrot.lane.b32.xlu0 %v911, 36
      %v930 = vpop.permute.xlu0 %929
      %931 = vrot.lane.b32.xlu0 %v919, 36
      %v932 = vpop.permute.xlu0 %931
      %933 = vrot.lane.b32.xlu0 %v912, 36
      %v934 = vpop.permute.xlu0 %933
      %935 = vrot.lane.b32.xlu0 %v920, 36
      %v936 = vpop.permute.xlu0 %935
      %vm937 = vcmask 293888
      %v938 = vsel %vm937, %v922, %v924
      %v939 = vsel %vm937, %v924, %v926
      %v940 = vsel %vm937, %v926, %v928
      %v941 = vsel %vm937, %v928, %v930
      %v942 = vsel %vm937, %v930, %v932
      %v943 = vsel %vm937, %v932, %v934
      %v944 = vsel %vm937, %v934, %v936
      %952 = vst [vmem:[#allocation2 + $0x188] sm:$0xf] %v938
      %953 = vst [vmem:[#allocation2 + $0x190] sm:$0xf] %v939
      %954 = vst [vmem:[#allocation2 + $0x198] sm:$0xf] %v940
      %955 = vst [vmem:[#allocation2 + $0x1a0] sm:$0xf] %v941
      %956 = vst [vmem:[#allocation2 + $0x1a8] sm:$0xf] %v942
      %957 = vst [vmem:[#allocation2 + $0x1b0] sm:$0xf] %v943
      %958 = vst.msk [vmem:[#allocation2 + $0x1b8] sm:$0xf] %vm294, %v944
      %v959 = vld [vmem:[%s271] sm:$0xff]
      %v960 = vld [vmem:[%s271 + $0x8] sm:$0xff]
      %v961 = vld [vmem:[%s271 + $0x10] sm:$0xff]
      %v962 = vld [vmem:[%s271 + $0x18] sm:$0xff]
      %v967 = vcombine.low %v959, %v959
      %v968 = vcombine.low %v960, %v960
      %v969 = vcombine.low %v961, %v961
      %v970 = vcombine.low %v962, %v962
      %971 = vrot.lane.b32.xlu0 %v967, 35
      %v972 = vpop.permute.xlu0 %971
      %973 = vrot.lane.b32.xlu0 %v959, 35
      %v974 = vpop.permute.xlu0 %973
      %975 = vrot.lane.b32.xlu0 %v968, 35
      %v976 = vpop.permute.xlu0 %975
      %977 = vrot.lane.b32.xlu0 %v960, 35
      %v978 = vpop.permute.xlu0 %977
      %979 = vrot.lane.b32.xlu0 %v969, 35
      %v980 = vpop.permute.xlu0 %979
      %981 = vrot.lane.b32.xlu0 %v961, 35
      %v982 = vpop.permute.xlu0 %981
      %983 = vrot.lane.b32.xlu0 %v970, 35
      %v984 = vpop.permute.xlu0 %983
      %985 = vrot.lane.b32.xlu0 %v962, 35
      %v986 = vpop.permute.xlu0 %985
      %vm987 = vcmask 285696
      %v988 = vsel %vm987, %v972, %v974
      %v989 = vsel %vm987, %v974, %v976
      %v990 = vsel %vm987, %v976, %v978
      %v991 = vsel %vm987, %v978, %v980
      %v992 = vsel %vm987, %v980, %v982
      %v993 = vsel %vm987, %v982, %v984
      %v994 = vsel %vm987, %v984, %v986
      %1002 = vst [vmem:[#allocation2 + $0x188] sm:$0xf0] %v988
      %1003 = vst [vmem:[#allocation2 + $0x190] sm:$0xf0] %v989
      %1004 = vst [vmem:[#allocation2 + $0x198] sm:$0xf0] %v990
      %1005 = vst [vmem:[#allocation2 + $0x1a0] sm:$0xf0] %v991
      %1006 = vst [vmem:[#allocation2 + $0x1a8] sm:$0xf0] %v992
      %1007 = vst [vmem:[#allocation2 + $0x1b0] sm:$0xf0] %v993
      %1008 = vst.msk [vmem:[#allocation2 + $0x1b8] sm:$0xf0] %vm342, %v994
      %v1009 = vld [vmem:[%s1] sm:$0x3]
      %v1010 = vld [vmem:[#allocation2] sm:$0xff]
      %v1011 = vld [vmem:[#allocation2 + $0x8] sm:$0xff]
      %v1012 = vld [vmem:[#allocation2 + $0x10] sm:$0xff]
      %v1013 = vld [vmem:[#allocation2 + $0x18] sm:$0xff]
      %v1014 = vld [vmem:[#allocation2 + $0x20] sm:$0xff]
      %v1015 = vld [vmem:[#allocation2 + $0x28] sm:$0xff]
      %v1016 = vld [vmem:[#allocation2 + $0x30] sm:$0xff]
      %v1017 = vld [vmem:[#allocation2 + $0x38] sm:$0xff]
      %v1018 = vld [vmem:[#allocation2 + $0x40] sm:$0xff]
      %v1019 = vld [vmem:[#allocation2 + $0x48] sm:$0xff]
      %v1020 = vld [vmem:[#allocation2 + $0x50] sm:$0xff]
      %v1021 = vld [vmem:[#allocation2 + $0x58] sm:$0xff]
      %v1022 = vld [vmem:[#allocation2 + $0x60] sm:$0xff]
      %v1023 = vld [vmem:[#allocation2 + $0x68] sm:$0xff]
      %v1024 = vld [vmem:[#allocation2 + $0x70] sm:$0xff]
      %v1025 = vld [vmem:[#allocation2 + $0x78] sm:$0xff]
      %v1026 = vld [vmem:[#allocation2 + $0x80] sm:$0xff]
      %v1027 = vld [vmem:[#allocation2 + $0x88] sm:$0xff]
      %v1028 = vld [vmem:[#allocation2 + $0x90] sm:$0xff]
      %v1029 = vld [vmem:[#allocation2 + $0x98] sm:$0xff]
      %v1030 = vld [vmem:[#allocation2 + $0xa0] sm:$0xff]
      %v1031 = vld [vmem:[#allocation2 + $0xa8] sm:$0xff]
      %v1032 = vld [vmem:[#allocation2 + $0xb0] sm:$0xff]
      %v1033 = vld [vmem:[#allocation2 + $0xb8] sm:$0xff]
      %v1034 = vld [vmem:[#allocation2 + $0xc0] sm:$0xff]
      %v1035 = vld [vmem:[#allocation2 + $0xc8] sm:$0xff]
      %v1036 = vld [vmem:[#allocation2 + $0xd0] sm:$0xff]
      %v1037 = vld [vmem:[#allocation2 + $0xd8] sm:$0xff]
      %v1038 = vld [vmem:[#allocation2 + $0xe0] sm:$0xff]
      %v1039 = vld [vmem:[#allocation2 + $0xe8] sm:$0xff]
      %v1040 = vld [vmem:[#allocation2 + $0xf0] sm:$0xff]
      %v1041 = vld [vmem:[#allocation2 + $0xf8] sm:$0xff]
      %v1042 = vld [vmem:[#allocation2 + $0x100] sm:$0xff]
      %v1043 = vld [vmem:[#allocation2 + $0x108] sm:$0xff]
      %v1044 = vld [vmem:[#allocation2 + $0x110] sm:$0xff]
      %v1045 = vld [vmem:[#allocation2 + $0x118] sm:$0xff]
      %v1046 = vld [vmem:[#allocation2 + $0x120] sm:$0xff]
      %v1047 = vld [vmem:[#allocation2 + $0x128] sm:$0xff]
      %v1048 = vld [vmem:[#allocation2 + $0x130] sm:$0xff]
      %v1049 = vld [vmem:[#allocation2 + $0x138] sm:$0xff]
      %v1050 = vld [vmem:[#allocation2 + $0x140] sm:$0xff]
      %v1051 = vld [vmem:[#allocation2 + $0x148] sm:$0xff]
      %v1052 = vld [vmem:[#allocation2 + $0x150] sm:$0xff]
      %v1053 = vld [vmem:[#allocation2 + $0x158] sm:$0xff]
      %v1054 = vld [vmem:[#allocation2 + $0x160] sm:$0xff]
      %v1055 = vld [vmem:[#allocation2 + $0x168] sm:$0xff]
      %v1056 = vld [vmem:[#allocation2 + $0x170] sm:$0xff]
      %v1057 = vld [vmem:[#allocation2 + $0x178] sm:$0xff]
      %v1058 = vld [vmem:[#allocation2 + $0x180] sm:$0xff]
      %v1059 = vld [vmem:[#allocation2 + $0x188] sm:$0xff]
      %v1060 = vld [vmem:[#allocation2 + $0x190] sm:$0xff]
      %v1061 = vld [vmem:[#allocation2 + $0x198] sm:$0xff]
      %v1062 = vld [vmem:[#allocation2 + $0x1a0] sm:$0xff]
      %v1063 = vld [vmem:[#allocation2 + $0x1a8] sm:$0xff]
      %v1064 = vld [vmem:[#allocation2 + $0x1b0] sm:$0xff]
      %v1065 = vld [vmem:[#allocation2 + $0x1b8] sm:$0xff]
      %v1066 = vld [vmem:[%s2] sm:$0x3]
      %1068 = vset.pattern.permute.xlu0 0
      %1069 = vperm.xlu0 %1068, %v1066
      %v1070 = vpop.permute.xlu0 %1069
      %vm1072 = vcmask 523264
      %v1074 = vsel %vm1072, %v1009, 0
      %1076 = vmatprep.subr.mxu0 %v1011
      %1077 = vmatpush1.msra.mxu0 %v1010
      %1078 = vmatprep.subr.mxu0 %v1018
      %1079 = vmatpush1.msra.mxu0 %v1017
      %1080 = vmatprep.subr.mxu0 %v1025
      %1081 = vmatpush1.msra.mxu0 %v1024
      %1082 = vmatprep.subr.mxu0 %v1032
      %1083 = vmatpush1.msra.mxu0 %v1031
      %1084 = vmatprep.subr.mxu0 %v1039
      %1085 = vmatpush1.msra.mxu0 %v1038
      %1086 = vmatprep.subr.mxu0 %v1046
      %1087 = vmatpush1.msra.mxu0 %v1045
      %1088 = vmatprep.subr.mxu0 %v1053
      %1089 = vmatpush1.msra.mxu0 %v1052
      %1090 = vmatprep.subr.mxu0 %v1060
      %1091 = vmatpush1.msra.mxu0 %v1059
      %1092 = vmatprep.subr.mxu0 0.0
      %1093 = vmatpush1.msra.mxu0 0.0
      %1094 = vmatprep.subr.mxu0 0.0
      %1095 = vmatpush1.msra.mxu0 0.0
      %1096 = vmatprep.subr.mxu0 0.0
      %1097 = vmatpush1.msra.mxu0 0.0
      %1098 = vmatprep.subr.mxu0 0.0
      %1099 = vmatpush1.msra.mxu0 0.0
      %1100 = vmatprep.subr.mxu0 0.0
      %1101 = vmatpush1.msra.mxu0 0.0
      %1102 = vmatprep.subr.mxu0 0.0
      %1103 = vmatpush1.msra.mxu0 0.0
      %1104 = vmatprep.subr.mxu0 0.0
      %1105 = vmatpush1.msra.mxu0 0.0
      %1106 = vmatprep.subr.mxu0 0.0
      %1107 = vmatpush1.msra.mxu0 0.0
      %1108 = vmatprep.subr.mxu0 0.0
      %1109 = vmatpush1.msra.mxu0 0.0
      %1110 = vmatprep.subr.mxu0 0.0
      %1111 = vmatpush1.msra.mxu0 0.0
      %1112 = vmatprep.subr.mxu0 0.0
      %1113 = vmatpush1.msra.mxu0 0.0
      %1114 = vmatprep.subr.mxu0 0.0
      %1115 = vmatpush1.msra.mxu0 0.0
      %1116 = vmatprep.subr.mxu0 0.0
      %1117 = vmatpush1.msra.mxu0 0.0
      %1118 = vmatprep.subr.mxu0 0.0
      %1119 = vmatpush1.msra.mxu0 0.0
      %1120 = vmatprep.subr.mxu0 0.0
      %1121 = vmatpush1.msra.mxu0 0.0
      %1122 = vmatprep.subr.mxu0 0.0
      %1123 = vmatpush1.msra.mxu0 0.0
      %1124 = vmatprep.subr.mxu0 0.0
      %1125 = vmatpush1.msra.mxu0 0.0
      %1126 = vmatprep.subr.mxu0 0.0
      %1127 = vmatpush1.msra.mxu0 0.0
      %1128 = vmatprep.subr.mxu0 0.0
      %1129 = vmatpush1.msra.mxu0 0.0
      %1130 = vmatprep.subr.mxu0 0.0
      %1131 = vmatpush1.msra.mxu0 0.0
      %1132 = vmatprep.subr.mxu0 0.0
      %1133 = vmatpush1.msra.mxu0 0.0
      %1134 = vmatprep.subr.mxu0 0.0
      %1135 = vmatpush1.msra.mxu0 0.0
      %1136 = vmatprep.subr.mxu0 0.0
      %1137 = vmatpush1.msra.mxu0 0.0
      %1138 = vmatprep.subr.mxu0 0.0
      %1139 = vmatpush1.msra.mxu0 0.0
      %1140 = vmatprep.mubr.f32.mxu0 0.0
      %1141 = vmatmul.mubr.f32.gmra.mrb[0].mxu0 %v1074
      %v1142 = vpop.f32.mrb[0].mxu0
      %v1143 = vadd.f32 %v1070, %v1142
      %v1144 = vpop.f32.mrb[0].mxu0
      %v1145 = vadd.f32 %v1070, %v1144
      %1146 = vdwg.mxu0
      %1147 = vmatprep.subr.mxu0 %v1013
      %1148 = vmatpush1.msra.mxu0 %v1012
      %1149 = vmatprep.subr.mxu0 %v1020
      %1150 = vmatpush1.msra.mxu0 %v1019
      %1151 = vmatprep.subr.mxu0 %v1027
      %1152 = vmatpush1.msra.mxu0 %v1026
      %1153 = vmatprep.subr.mxu0 %v1034
      %1154 = vmatpush1.msra.mxu0 %v1033
      %1155 = vmatprep.subr.mxu0 %v1041
      %1156 = vmatpush1.msra.mxu0 %v1040
      %1157 = vmatprep.subr.mxu0 %v1048
      %1158 = vmatpush1.msra.mxu0 %v1047
      %1159 = vmatprep.subr.mxu0 %v1055
      %1160 = vmatpush1.msra.mxu0 %v1054
      %1161 = vmatprep.subr.mxu0 %v1062
      %1162 = vmatpush1.msra.mxu0 %v1061
      %1163 = vmatprep.subr.mxu0 0.0
      %1164 = vmatpush1.msra.mxu0 0.0
      %1165 = vmatprep.subr.mxu0 0.0
      %1166 = vmatpush1.msra.mxu0 0.0
      %1167 = vmatprep.subr.mxu0 0.0
      %1168 = vmatpush1.msra.mxu0 0.0
      %1169 = vmatprep.subr.mxu0 0.0
      %1170 = vmatpush1.msra.mxu0 0.0
      %1171 = vmatprep.subr.mxu0 0.0
      %1172 = vmatpush1.msra.mxu0 0.0
      %1173 = vmatprep.subr.mxu0 0.0
      %1174 = vmatpush1.msra.mxu0 0.0
      %1175 = vmatprep.subr.mxu0 0.0
      %1176 = vmatpush1.msra.mxu0 0.0
      %1177 = vmatprep.subr.mxu0 0.0
      %1178 = vmatpush1.msra.mxu0 0.0
      %1179 = vmatprep.subr.mxu0 0.0
      %1180 = vmatpush1.msra.mxu0 0.0
      %1181 = vmatprep.subr.mxu0 0.0
      %1182 = vmatpush1.msra.mxu0 0.0
      %1183 = vmatprep.subr.mxu0 0.0
      %1184 = vmatpush1.msra.mxu0 0.0
      %1185 = vmatprep.subr.mxu0 0.0
      %1186 = vmatpush1.msra.mxu0 0.0
      %1187 = vmatprep.subr.mxu0 0.0
      %1188 = vmatpush1.msra.mxu0 0.0
      %1189 = vmatprep.subr.mxu0 0.0
      %1190 = vmatpush1.msra.mxu0 0.0
      %1191 = vmatprep.subr.mxu0 0.0
      %1192 = vmatpush1.msra.mxu0 0.0
      %1193 = vmatprep.subr.mxu0 0.0
      %1194 = vmatpush1.msra.mxu0 0.0
      %1195 = vmatprep.subr.mxu0 0.0
      %1196 = vmatpush1.msra.mxu0 0.0
      %1197 = vmatprep.subr.mxu0 0.0
      %1198 = vmatpush1.msra.mxu0 0.0
      %1199 = vmatprep.subr.mxu0 0.0
      %1200 = vmatpush1.msra.mxu0 0.0
      %1201 = vmatprep.subr.mxu0 0.0
      %1202 = vmatpush1.msra.mxu0 0.0
      %1203 = vmatprep.subr.mxu0 0.0
      %1204 = vmatpush1.msra.mxu0 0.0
      %1205 = vmatprep.subr.mxu0 0.0
      %1206 = vmatpush1.msra.mxu0 0.0
      %1207 = vmatprep.subr.mxu0 0.0
      %1208 = vmatpush1.msra.mxu0 0.0
      %1209 = vmatprep.subr.mxu0 0.0
      %1210 = vmatpush1.msra.mxu0 0.0
      %1211 = vmatprep.mubr.f32.mxu0 0.0
      %1212 = vmatmul.mubr.f32.gmra.mrb[0].mxu0 %v1074
      %v1213 = vpop.f32.mrb[0].mxu0
      %v1214 = vadd.f32 %v1070, %v1213
      %v1215 = vpop.f32.mrb[0].mxu0
      %v1216 = vadd.f32 %v1070, %v1215
      %1217 = vdwg.mxu0
      %1218 = vmatprep.subr.mxu0 %v1015
      %1219 = vmatpush1.msra.mxu0 %v1014
      %1220 = vmatprep.subr.mxu0 %v1022
      %1221 = vmatpush1.msra.mxu0 %v1021
      %1222 = vmatprep.subr.mxu0 %v1029
      %1223 = vmatpush1.msra.mxu0 %v1028
      %1224 = vmatprep.subr.mxu0 %v1036
      %1225 = vmatpush1.msra.mxu0 %v1035
      %1226 = vmatprep.subr.mxu0 %v1043
      %1227 = vmatpush1.msra.mxu0 %v1042
      %1228 = vmatprep.subr.mxu0 %v1050
      %1229 = vmatpush1.msra.mxu0 %v1049
      %1230 = vmatprep.subr.mxu0 %v1057
      %1231 = vmatpush1.msra.mxu0 %v1056
      %1232 = vmatprep.subr.mxu0 %v1064
      %1233 = vmatpush1.msra.mxu0 %v1063
      %1234 = vmatprep.subr.mxu0 0.0
      %1235 = vmatpush1.msra.mxu0 0.0
      %1236 = vmatprep.subr.mxu0 0.0
      %1237 = vmatpush1.msra.mxu0 0.0
      %1238 = vmatprep.subr.mxu0 0.0
      %1239 = vmatpush1.msra.mxu0 0.0
      %1240 = vmatprep.subr.mxu0 0.0
      %1241 = vmatpush1.msra.mxu0 0.0
      %1242 = vmatprep.subr.mxu0 0.0
      %1243 = vmatpush1.msra.mxu0 0.0
      %1244 = vmatprep.subr.mxu0 0.0
      %1245 = vmatpush1.msra.mxu0 0.0
      %1246 = vmatprep.subr.mxu0 0.0
      %1247 = vmatpush1.msra.mxu0 0.0
      %1248 = vmatprep.subr.mxu0 0.0
      %1249 = vmatpush1.msra.mxu0 0.0
      %1250 = vmatprep.subr.mxu0 0.0
      %1251 = vmatpush1.msra.mxu0 0.0
      %1252 = vmatprep.subr.mxu0 0.0
      %1253 = vmatpush1.msra.mxu0 0.0
      %1254 = vmatprep.subr.mxu0 0.0
      %1255 = vmatpush1.msra.mxu0 0.0
      %1256 = vmatprep.subr.mxu0 0.0
      %1257 = vmatpush1.msra.mxu0 0.0
      %1258 = vmatprep.subr.mxu0 0.0
      %1259 = vmatpush1.msra.mxu0 0.0
      %1260 = vmatprep.subr.mxu0 0.0
      %1261 = vmatpush1.msra.mxu0 0.0
      %1262 = vmatprep.subr.mxu0 0.0
      %1263 = vmatpush1.msra.mxu0 0.0
      %1264 = vmatprep.subr.mxu0 0.0
      %1265 = vmatpush1.msra.mxu0 0.0
      %1266 = vmatprep.subr.mxu0 0.0
      %1267 = vmatpush1.msra.mxu0 0.0
      %1268 = vmatprep.subr.mxu0 0.0
      %1269 = vmatpush1.msra.mxu0 0.0
      %1270 = vmatprep.subr.mxu0 0.0
      %1271 = vmatpush1.msra.mxu0 0.0
      %1272 = vmatprep.subr.mxu0 0.0
      %1273 = vmatpush1.msra.mxu0 0.0
      %1274 = vmatprep.subr.mxu0 0.0
      %1275 = vmatpush1.msra.mxu0 0.0
      %1276 = vmatprep.subr.mxu0 0.0
      %1277 = vmatpush1.msra.mxu0 0.0
      %1278 = vmatprep.subr.mxu0 0.0
      %1279 = vmatpush1.msra.mxu0 0.0
      %1280 = vmatprep.subr.mxu0 0.0
      %1281 = vmatpush1.msra.mxu0 0.0
      %1282 = vmatprep.mubr.f32.mxu0 0.0
      %1283 = vmatmul.mubr.f32.gmra.mrb[0].mxu0 %v1074
      %v1284 = vpop.f32.mrb[0].mxu0
      %v1285 = vadd.f32 %v1070, %v1284
      %v1286 = vpop.f32.mrb[0].mxu0
      %v1287 = vadd.f32 %v1070, %v1286
      %1288 = vdwg.mxu0
      %1289 = vmatprep.subr.mxu0 0.0
      %1290 = vmatpush1.msra.mxu0 %v1016
      %1291 = vmatprep.subr.mxu0 0.0
      %1292 = vmatpush1.msra.mxu0 %v1023
      %1293 = vmatprep.subr.mxu0 0.0
      %1294 = vmatpush1.msra.mxu0 %v1030
      %1295 = vmatprep.subr.mxu0 0.0
      %1296 = vmatpush1.msra.mxu0 %v1037
      %1297 = vmatprep.subr.mxu0 0.0
      %1298 = vmatpush1.msra.mxu0 %v1044
      %1299 = vmatprep.subr.mxu0 0.0
      %1300 = vmatpush1.msra.mxu0 %v1051
      %1301 = vmatprep.subr.mxu0 0.0
      %1302 = vmatpush1.msra.mxu0 %v1058
      %1303 = vmatprep.subr.mxu0 0.0
      %1304 = vmatpush1.msra.mxu0 %v1065
      %1305 = vmatprep.subr.mxu0 0.0
      %1306 = vmatpush1.msra.mxu0 0.0
      %1307 = vmatprep.subr.mxu0 0.0
      %1308 = vmatpush1.msra.mxu0 0.0
      %1309 = vmatprep.subr.mxu0 0.0
      %1310 = vmatpush1.msra.mxu0 0.0
      %1311 = vmatprep.subr.mxu0 0.0
      %1312 = vmatpush1.msra.mxu0 0.0
      %1313 = vmatprep.subr.mxu0 0.0
      %1314 = vmatpush1.msra.mxu0 0.0
      %1315 = vmatprep.subr.mxu0 0.0
      %1316 = vmatpush1.msra.mxu0 0.0
      %1317 = vmatprep.subr.mxu0 0.0
      %1318 = vmatpush1.msra.mxu0 0.0
      %1319 = vmatprep.subr.mxu0 0.0
      %1320 = vmatpush1.msra.mxu0 0.0
      %1321 = vmatprep.subr.mxu0 0.0
      %1322 = vmatpush1.msra.mxu0 0.0
      %1323 = vmatprep.subr.mxu0 0.0
      %1324 = vmatpush1.msra.mxu0 0.0
      %1325 = vmatprep.subr.mxu0 0.0
      %1326 = vmatpush1.msra.mxu0 0.0
      %1327 = vmatprep.subr.mxu0 0.0
      %1328 = vmatpush1.msra.mxu0 0.0
      %1329 = vmatprep.subr.mxu0 0.0
      %1330 = vmatpush1.msra.mxu0 0.0
      %1331 = vmatprep.subr.mxu0 0.0
      %1332 = vmatpush1.msra.mxu0 0.0
      %1333 = vmatprep.subr.mxu0 0.0
      %1334 = vmatpush1.msra.mxu0 0.0
      %1335 = vmatprep.subr.mxu0 0.0
      %1336 = vmatpush1.msra.mxu0 0.0
      %1337 = vmatprep.subr.mxu0 0.0
      %1338 = vmatpush1.msra.mxu0 0.0
      %1339 = vmatprep.subr.mxu0 0.0
      %1340 = vmatpush1.msra.mxu0 0.0
      %1341 = vmatprep.subr.mxu0 0.0
      %1342 = vmatpush1.msra.mxu0 0.0
      %1343 = vmatprep.subr.mxu0 0.0
      %1344 = vmatpush1.msra.mxu0 0.0
      %1345 = vmatprep.subr.mxu0 0.0
      %1346 = vmatpush1.msra.mxu0 0.0
      %1347 = vmatprep.subr.mxu0 0.0
      %1348 = vmatpush1.msra.mxu0 0.0
      %1349 = vmatprep.subr.mxu0 0.0
      %1350 = vmatpush1.msra.mxu0 0.0
      %1351 = vmatprep.subr.mxu0 0.0
      %1352 = vmatpush1.msra.mxu0 0.0
      %1353 = vmatprep.mubr.f32.mxu0 0.0
      %1354 = vmatmul.mubr.f32.gmra.mrb[0].mxu0 %v1074
      %v1355 = vpop.f32.mrb[0].mxu0
      %v1356 = vadd.f32 %v1070, %v1355
      %v1357 = vpop.f32.mrb[0].mxu0
      %1358 = vdwg.mxu0
      %v1359 = vmax.f32 %v1143, 0.0
      %v1360 = vmax.f32 %v1145, 0.0
      %v1361 = vmax.f32 %v1214, 0.0
      %v1362 = vmax.f32 %v1216, 0.0
      %v1363 = vmax.f32 %v1285, 0.0
      %v1364 = vmax.f32 %v1287, 0.0
      %v1365 = vmax.f32 %v1356, 0.0
      %v1366 = vld [vmem:[%s4] sm:$0x1]
      %v1367 = vld [vmem:[%s3] sm:$0xff]
      %v1368 = vld [vmem:[%s3 + $0x8] sm:$0xff]
      %v1369 = vld [vmem:[%s3 + $0x10] sm:$0xff]
      %v1370 = vld [vmem:[%s3 + $0x18] sm:$0xff]
      %v1371 = vld [vmem:[%s3 + $0x20] sm:$0xff]
      %v1372 = vld [vmem:[%s3 + $0x28] sm:$0xff]
      %v1373 = vld [vmem:[%s3 + $0x30] sm:$0xff]
      %v1374 = vld [vmem:[%s3 + $0x38] sm:$0xff]
      %v1375 = vld [vmem:[%s3 + $0x40] sm:$0xff]
      %v1376 = vld [vmem:[%s3 + $0x48] sm:$0xff]
      %v1377 = vld [vmem:[%s3 + $0x50] sm:$0xff]
      %v1378 = vld [vmem:[%s3 + $0x58] sm:$0xff]
      %v1379 = vld [vmem:[%s3 + $0x60] sm:$0xff]
      %v1380 = vld [vmem:[%s3 + $0x68] sm:$0xff]
      %v1381 = vld [vmem:[%s3 + $0x70] sm:$0xff]
      %v1382 = vld [vmem:[%s3 + $0x78] sm:$0xff]
      %v1383 = vld [vmem:[%s3 + $0x80] sm:$0xff]
      %v1384 = vld [vmem:[%s3 + $0x88] sm:$0xff]
      %v1385 = vld [vmem:[%s3 + $0x90] sm:$0xff]
      %v1386 = vld [vmem:[%s3 + $0x98] sm:$0xff]
      %v1387 = vld [vmem:[%s3 + $0xa0] sm:$0xff]
      %v1388 = vld [vmem:[%s3 + $0xa8] sm:$0xff]
      %v1389 = vld [vmem:[%s3 + $0xb0] sm:$0xff]
      %v1390 = vld [vmem:[%s3 + $0xb8] sm:$0xff]
      %v1391 = vld [vmem:[%s3 + $0xc0] sm:$0xff]
      %v1392 = vld [vmem:[%s3 + $0xc8] sm:$0xff]
      %v1393 = vld [vmem:[%s3 + $0xd0] sm:$0xff]
      %v1394 = vld [vmem:[%s3 + $0xd8] sm:$0xff]
      %v1395 = vld [vmem:[%s3 + $0xe0] sm:$0xff]
      %v1396 = vld [vmem:[%s3 + $0xe8] sm:$0xff]
      %v1397 = vld [vmem:[%s3 + $0xf0] sm:$0xff]
      %v1398 = vld [vmem:[%s3 + $0xf8] sm:$0xff]
      %v1399 = vld [vmem:[%s3 + $0x100] sm:$0xff]
      %v1400 = vld [vmem:[%s3 + $0x108] sm:$0xff]
      %v1401 = vld [vmem:[%s3 + $0x110] sm:$0xff]
      %v1402 = vld [vmem:[%s3 + $0x118] sm:$0xff]
      %v1403 = vld [vmem:[%s3 + $0x120] sm:$0xff]
      %v1404 = vld [vmem:[%s3 + $0x128] sm:$0xff]
      %v1405 = vld [vmem:[%s3 + $0x130] sm:$0xff]
      %v1406 = vld [vmem:[%s3 + $0x138] sm:$0xff]
      %v1407 = vld [vmem:[%s3 + $0x140] sm:$0xff]
      %v1408 = vld [vmem:[%s3 + $0x148] sm:$0xff]
      %v1409 = vld [vmem:[%s3 + $0x150] sm:$0xff]
      %v1410 = vld [vmem:[%s3 + $0x158] sm:$0xff]
      %v1411 = vld [vmem:[%s3 + $0x160] sm:$0xff]
      %v1412 = vld [vmem:[%s3 + $0x168] sm:$0xff]
      %v1413 = vld [vmem:[%s3 + $0x170] sm:$0xff]
      %v1414 = vld [vmem:[%s3 + $0x178] sm:$0xff]
      %v1415 = vld [vmem:[%s3 + $0x180] sm:$0xff]
      %v1416 = vld [vmem:[%s3 + $0x188] sm:$0xff]
      %v1417 = vld [vmem:[%s3 + $0x190] sm:$0xff]
      %v1418 = vld [vmem:[%s3 + $0x198] sm:$0xff]
      %v1419 = vld [vmem:[%s3 + $0x1a0] sm:$0xff]
      %v1420 = vld [vmem:[%s3 + $0x1a8] sm:$0xff]
      %v1421 = vld [vmem:[%s3 + $0x1b0] sm:$0xff]
      %v1422 = vld [vmem:[%s3 + $0x1b8] sm:$0xff]
      %v1423 = vld [vmem:[%s3 + $0x1c0] sm:$0xff]
      %v1424 = vld [vmem:[%s3 + $0x1c8] sm:$0xff]
      %v1425 = vld [vmem:[%s3 + $0x1d0] sm:$0xff]
      %v1426 = vld [vmem:[%s3 + $0x1d8] sm:$0xff]
      %v1427 = vld [vmem:[%s3 + $0x1e0] sm:$0xff]
      %v1428 = vld [vmem:[%s3 + $0x1e8] sm:$0xff]
      %v1429 = vld [vmem:[%s3 + $0x1f0] sm:$0xff]
      %v1430 = vld [vmem:[%s3 + $0x1f8] sm:$0xff]
      %v1431 = vld [vmem:[%s3 + $0x200] sm:$0xff]
      %v1432 = vld [vmem:[%s3 + $0x208] sm:$0xff]
      %v1433 = vld [vmem:[%s3 + $0x210] sm:$0xff]
      %v1434 = vld [vmem:[%s3 + $0x218] sm:$0xff]
      %v1435 = vld [vmem:[%s3 + $0x220] sm:$0xff]
      %v1436 = vld [vmem:[%s3 + $0x228] sm:$0xff]
      %v1437 = vld [vmem:[%s3 + $0x230] sm:$0xff]
      %v1438 = vld [vmem:[%s3 + $0x238] sm:$0xff]
      %v1439 = vld [vmem:[%s3 + $0x240] sm:$0xff]
      %v1440 = vld [vmem:[%s3 + $0x248] sm:$0xff]
      %v1441 = vld [vmem:[%s3 + $0x250] sm:$0xff]
      %v1442 = vld [vmem:[%s3 + $0x258] sm:$0xff]
      %v1443 = vld [vmem:[%s3 + $0x260] sm:$0xff]
      %v1444 = vld [vmem:[%s3 + $0x268] sm:$0xff]
      %v1445 = vld [vmem:[%s3 + $0x270] sm:$0xff]
      %v1446 = vld [vmem:[%s3 + $0x278] sm:$0xff]
      %v1447 = vld [vmem:[%s3 + $0x280] sm:$0xff]
      %v1448 = vld [vmem:[%s3 + $0x288] sm:$0xff]
      %v1449 = vld [vmem:[%s3 + $0x290] sm:$0xff]
      %v1450 = vld [vmem:[%s3 + $0x298] sm:$0xff]
      %v1451 = vld [vmem:[%s3 + $0x2a0] sm:$0xff]
      %v1452 = vld [vmem:[%s3 + $0x2a8] sm:$0xff]
      %v1453 = vld [vmem:[%s3 + $0x2b0] sm:$0xff]
      %v1454 = vld [vmem:[%s3 + $0x2b8] sm:$0xff]
      %v1455 = vld [vmem:[%s3 + $0x2c0] sm:$0xff]
      %v1456 = vld [vmem:[%s3 + $0x2c8] sm:$0xff]
      %v1457 = vld [vmem:[%s3 + $0x2d0] sm:$0xff]
      %v1458 = vld [vmem:[%s3 + $0x2d8] sm:$0xff]
      %v1459 = vld [vmem:[%s3 + $0x2e0] sm:$0xff]
      %v1460 = vld [vmem:[%s3 + $0x2e8] sm:$0xff]
      %v1461 = vld [vmem:[%s3 + $0x2f0] sm:$0xff]
      %v1462 = vld [vmem:[%s3 + $0x2f8] sm:$0xff]
      %v1463 = vld [vmem:[%s3 + $0x300] sm:$0xff]
      %v1464 = vld [vmem:[%s3 + $0x308] sm:$0xff]
      %v1465 = vld [vmem:[%s3 + $0x310] sm:$0xff]
      %v1466 = vld [vmem:[%s3 + $0x318] sm:$0xff]
      %v1467 = vld [vmem:[%s3 + $0x320] sm:$0xff]
      %v1468 = vld [vmem:[%s3 + $0x328] sm:$0x3]
      %vm1469 = vcmask 343040
      %v1471 = vsel %vm1469, %v1365, 0
      %vm1473 = vcmask 1041408
      %v1475 = vsel %vm1473, %v1468, 0
      %1477 = vmatprep.subr.mxu0 0.0
      %1478 = vmatpush1.msra.mxu0 %v1367
      %1479 = vmatprep.subr.mxu0 0.0
      %1480 = vmatpush1.msra.mxu0 %v1368
      %1481 = vmatprep.subr.mxu0 0.0
      %1482 = vmatpush1.msra.mxu0 %v1369
      %1483 = vmatprep.subr.mxu0 0.0
      %1484 = vmatpush1.msra.mxu0 %v1370
      %1485 = vmatprep.subr.mxu0 0.0
      %1486 = vmatpush1.msra.mxu0 %v1371
      %1487 = vmatprep.subr.mxu0 0.0
      %1488 = vmatpush1.msra.mxu0 %v1372
      %1489 = vmatprep.subr.mxu0 0.0
      %1490 = vmatpush1.msra.mxu0 %v1373
      %1491 = vmatprep.subr.mxu0 0.0
      %1492 = vmatpush1.msra.mxu0 %v1374
      %1493 = vmatprep.subr.mxu0 0.0
      %1494 = vmatpush1.msra.mxu0 %v1375
      %1495 = vmatprep.subr.mxu0 0.0
      %1496 = vmatpush1.msra.mxu0 %v1376
      %1497 = vmatprep.subr.mxu0 0.0
      %1498 = vmatpush1.msra.mxu0 %v1377
      %1499 = vmatprep.subr.mxu0 0.0
      %1500 = vmatpush1.msra.mxu0 %v1378
      %1501 = vmatprep.subr.mxu0 0.0
      %1502 = vmatpush1.msra.mxu0 %v1379
      %1503 = vmatprep.subr.mxu0 0.0
      %1504 = vmatpush1.msra.mxu0 %v1380
      %1505 = vmatprep.subr.mxu0 0.0
      %1506 = vmatpush1.msra.mxu0 %v1381
      %1507 = vmatprep.subr.mxu0 0.0
      %1508 = vmatpush1.msra.mxu0 %v1382
      %1509 = vmatprep.subr.mxu0 0.0
      %1510 = vmatpush1.msra.mxu0 %v1383
      %1511 = vmatprep.subr.mxu0 0.0
      %1512 = vmatpush1.msra.mxu0 %v1384
      %1513 = vmatprep.subr.mxu0 0.0
      %1514 = vmatpush1.msra.mxu0 %v1385
      %1515 = vmatprep.subr.mxu0 0.0
      %1516 = vmatpush1.msra.mxu0 %v1386
      %1517 = vmatprep.subr.mxu0 0.0
      %1518 = vmatpush1.msra.mxu0 %v1387
      %1519 = vmatprep.subr.mxu0 0.0
      %1520 = vmatpush1.msra.mxu0 %v1388
      %1521 = vmatprep.subr.mxu0 0.0
      %1522 = vmatpush1.msra.mxu0 %v1389
      %1523 = vmatprep.subr.mxu0 0.0
      %1524 = vmatpush1.msra.mxu0 %v1390
      %1525 = vmatprep.subr.mxu0 0.0
      %1526 = vmatpush1.msra.mxu0 %v1391
      %1527 = vmatprep.subr.mxu0 0.0
      %1528 = vmatpush1.msra.mxu0 %v1392
      %1529 = vmatprep.subr.mxu0 0.0
      %1530 = vmatpush1.msra.mxu0 %v1393
      %1531 = vmatprep.subr.mxu0 0.0
      %1532 = vmatpush1.msra.mxu0 %v1394
      %1533 = vmatprep.subr.mxu0 0.0
      %1534 = vmatpush1.msra.mxu0 %v1395
      %1535 = vmatprep.subr.mxu0 0.0
      %1536 = vmatpush1.msra.mxu0 %v1396
      %1537 = vmatprep.subr.mxu0 0.0
      %1538 = vmatpush1.msra.mxu0 %v1397
      %1539 = vmatprep.subr.mxu0 0.0
      %1540 = vmatpush1.msra.mxu0 %v1398
      %1541 = vmatprep.mubr.f32.mxu0 %v1360
      %1542 = vmatmul.mubr.f32.gmra.mrb[0].mxu0 %v1359
      %v1543 = vpop.f32.mrb[0].mxu0
      %v1544 = vadd.f32 0.0, %v1543
      %v1545 = vpop.f32.mrb[0].mxu0
      %1546 = vdwg.mxu0
      %1547 = vmatprep.subr.mxu0 0.0
      %1548 = vmatpush1.msra.mxu0 %v1399
      %1549 = vmatprep.subr.mxu0 0.0
      %1550 = vmatpush1.msra.mxu0 %v1400
      %1551 = vmatprep.subr.mxu0 0.0
      %1552 = vmatpush1.msra.mxu0 %v1401
      %1553 = vmatprep.subr.mxu0 0.0
      %1554 = vmatpush1.msra.mxu0 %v1402
      %1555 = vmatprep.subr.mxu0 0.0
      %1556 = vmatpush1.msra.mxu0 %v1403
      %1557 = vmatprep.subr.mxu0 0.0
      %1558 = vmatpush1.msra.mxu0 %v1404
      %1559 = vmatprep.subr.mxu0 0.0
      %1560 = vmatpush1.msra.mxu0 %v1405
      %1561 = vmatprep.subr.mxu0 0.0
      %1562 = vmatpush1.msra.mxu0 %v1406
      %1563 = vmatprep.subr.mxu0 0.0
      %1564 = vmatpush1.msra.mxu0 %v1407
      %1565 = vmatprep.subr.mxu0 0.0
      %1566 = vmatpush1.msra.mxu0 %v1408
      %1567 = vmatprep.subr.mxu0 0.0
      %1568 = vmatpush1.msra.mxu0 %v1409
      %1569 = vmatprep.subr.mxu0 0.0
      %1570 = vmatpush1.msra.mxu0 %v1410
      %1571 = vmatprep.subr.mxu0 0.0
      %1572 = vmatpush1.msra.mxu0 %v1411
      %1573 = vmatprep.subr.mxu0 0.0
      %1574 = vmatpush1.msra.mxu0 %v1412
      %1575 = vmatprep.subr.mxu0 0.0
      %1576 = vmatpush1.msra.mxu0 %v1413
      %1577 = vmatprep.subr.mxu0 0.0
      %1578 = vmatpush1.msra.mxu0 %v1414
      %1579 = vmatprep.subr.mxu0 0.0
      %1580 = vmatpush1.msra.mxu0 %v1415
      %1581 = vmatprep.subr.mxu0 0.0
      %1582 = vmatpush1.msra.mxu0 %v1416
      %1583 = vmatprep.subr.mxu0 0.0
      %1584 = vmatpush1.msra.mxu0 %v1417
      %1585 = vmatprep.subr.mxu0 0.0
      %1586 = vmatpush1.msra.mxu0 %v1418
      %1587 = vmatprep.subr.mxu0 0.0
      %1588 = vmatpush1.msra.mxu0 %v1419
      %1589 = vmatprep.subr.mxu0 0.0
      %1590 = vmatpush1.msra.mxu0 %v1420
      %1591 = vmatprep.subr.mxu0 0.0
      %1592 = vmatpush1.msra.mxu0 %v1421
      %1593 = vmatprep.subr.mxu0 0.0
      %1594 = vmatpush1.msra.mxu0 %v1422
      %1595 = vmatprep.subr.mxu0 0.0
      %1596 = vmatpush1.msra.mxu0 %v1423
      %1597 = vmatprep.subr.mxu0 0.0
      %1598 = vmatpush1.msra.mxu0 %v1424
      %1599 = vmatprep.subr.mxu0 0.0
      %1600 = vmatpush1.msra.mxu0 %v1425
      %1601 = vmatprep.subr.mxu0 0.0
      %1602 = vmatpush1.msra.mxu0 %v1426
      %1603 = vmatprep.subr.mxu0 0.0
      %1604 = vmatpush1.msra.mxu0 %v1427
      %1605 = vmatprep.subr.mxu0 0.0
      %1606 = vmatpush1.msra.mxu0 %v1428
      %1607 = vmatprep.subr.mxu0 0.0
      %1608 = vmatpush1.msra.mxu0 %v1429
      %1609 = vmatprep.subr.mxu0 0.0
      %1610 = vmatpush1.msra.mxu0 %v1430
      %1611 = vmatprep.mubr.f32.mxu0 %v1362
      %1612 = vmatmul.mubr.f32.gmra.mrb[0].mxu0 %v1361
      %v1613 = vpop.f32.mrb[0].mxu0
      %v1614 = vadd.f32 %v1544, %v1613
      %v1615 = vpop.f32.mrb[0].mxu0
      %1616 = vdwg.mxu0
      %1617 = vmatprep.subr.mxu0 0.0
      %1618 = vmatpush1.msra.mxu0 %v1431
      %1619 = vmatprep.subr.mxu0 0.0
      %1620 = vmatpush1.msra.mxu0 %v1432
      %1621 = vmatprep.subr.mxu0 0.0
      %1622 = vmatpush1.msra.mxu0 %v1433
      %1623 = vmatprep.subr.mxu0 0.0
      %1624 = vmatpush1.msra.mxu0 %v1434
      %1625 = vmatprep.subr.mxu0 0.0
      %1626 = vmatpush1.msra.mxu0 %v1435
      %1627 = vmatprep.subr.mxu0 0.0
      %1628 = vmatpush1.msra.mxu0 %v1436
      %1629 = vmatprep.subr.mxu0 0.0
      %1630 = vmatpush1.msra.mxu0 %v1437
      %1631 = vmatprep.subr.mxu0 0.0
      %1632 = vmatpush1.msra.mxu0 %v1438
      %1633 = vmatprep.subr.mxu0 0.0
      %1634 = vmatpush1.msra.mxu0 %v1439
      %1635 = vmatprep.subr.mxu0 0.0
      %1636 = vmatpush1.msra.mxu0 %v1440
      %1637 = vmatprep.subr.mxu0 0.0
      %1638 = vmatpush1.msra.mxu0 %v1441
      %1639 = vmatprep.subr.mxu0 0.0
      %1640 = vmatpush1.msra.mxu0 %v1442
      %1641 = vmatprep.subr.mxu0 0.0
      %1642 = vmatpush1.msra.mxu0 %v1443
      %1643 = vmatprep.subr.mxu0 0.0
      %1644 = vmatpush1.msra.mxu0 %v1444
      %1645 = vmatprep.subr.mxu0 0.0
      %1646 = vmatpush1.msra.mxu0 %v1445
      %1647 = vmatprep.subr.mxu0 0.0
      %1648 = vmatpush1.msra.mxu0 %v1446
      %1649 = vmatprep.subr.mxu0 0.0
      %1650 = vmatpush1.msra.mxu0 %v1447
      %1651 = vmatprep.subr.mxu0 0.0
      %1652 = vmatpush1.msra.mxu0 %v1448
      %1653 = vmatprep.subr.mxu0 0.0
      %1654 = vmatpush1.msra.mxu0 %v1449
      %1655 = vmatprep.subr.mxu0 0.0
      %1656 = vmatpush1.msra.mxu0 %v1450
      %1657 = vmatprep.subr.mxu0 0.0
      %1658 = vmatpush1.msra.mxu0 %v1451
      %1659 = vmatprep.subr.mxu0 0.0
      %1660 = vmatpush1.msra.mxu0 %v1452
      %1661 = vmatprep.subr.mxu0 0.0
      %1662 = vmatpush1.msra.mxu0 %v1453
      %1663 = vmatprep.subr.mxu0 0.0
      %1664 = vmatpush1.msra.mxu0 %v1454
      %1665 = vmatprep.subr.mxu0 0.0
      %1666 = vmatpush1.msra.mxu0 %v1455
      %1667 = vmatprep.subr.mxu0 0.0
      %1668 = vmatpush1.msra.mxu0 %v1456
      %1669 = vmatprep.subr.mxu0 0.0
      %1670 = vmatpush1.msra.mxu0 %v1457
      %1671 = vmatprep.subr.mxu0 0.0
      %1672 = vmatpush1.msra.mxu0 %v1458
      %1673 = vmatprep.subr.mxu0 0.0
      %1674 = vmatpush1.msra.mxu0 %v1459
      %1675 = vmatprep.subr.mxu0 0.0
      %1676 = vmatpush1.msra.mxu0 %v1460
      %1677 = vmatprep.subr.mxu0 0.0
      %1678 = vmatpush1.msra.mxu0 %v1461
      %1679 = vmatprep.subr.mxu0 0.0
      %1680 = vmatpush1.msra.mxu0 %v1462
      %1681 = vmatprep.mubr.f32.mxu0 %v1364
      %1682 = vmatmul.mubr.f32.gmra.mrb[0].mxu0 %v1363
      %v1683 = vpop.f32.mrb[0].mxu0
      %v1684 = vadd.f32 %v1614, %v1683
      %v1685 = vpop.f32.mrb[0].mxu0
      %1686 = vdwg.mxu0
      %1687 = vmatprep.subr.mxu0 0.0
      %1688 = vmatpush1.msra.mxu0 %v1463
      %1689 = vmatprep.subr.mxu0 0.0
      %1690 = vmatpush1.msra.mxu0 %v1464
      %1691 = vmatprep.subr.mxu0 0.0
      %1692 = vmatpush1.msra.mxu0 %v1465
      %1693 = vmatprep.subr.mxu0 0.0
      %1694 = vmatpush1.msra.mxu0 %v1466
      %1695 = vmatprep.subr.mxu0 0.0
      %1696 = vmatpush1.msra.mxu0 %v1467
      %1697 = vmatprep.subr.mxu0 0.0
      %1698 = vmatpush1.msra.mxu0 %v1475
      %1699 = vmatprep.subr.mxu0 0.0
      %1700 = vmatpush1.msra.mxu0 0.0
      %1701 = vmatprep.subr.mxu0 0.0
      %1702 = vmatpush1.msra.mxu0 0.0
      %1703 = vmatprep.subr.mxu0 0.0
      %1704 = vmatpush1.msra.mxu0 0.0
      %1705 = vmatprep.subr.mxu0 0.0
      %1706 = vmatpush1.msra.mxu0 0.0
      %1707 = vmatprep.subr.mxu0 0.0
      %1708 = vmatpush1.msra.mxu0 0.0
      %1709 = vmatprep.subr.mxu0 0.0
      %1710 = vmatpush1.msra.mxu0 0.0
      %1711 = vmatprep.subr.mxu0 0.0
      %1712 = vmatpush1.msra.mxu0 0.0
      %1713 = vmatprep.subr.mxu0 0.0
      %1714 = vmatpush1.msra.mxu0 0.0
      %1715 = vmatprep.subr.mxu0 0.0
      %1716 = vmatpush1.msra.mxu0 0.0
      %1717 = vmatprep.subr.mxu0 0.0
      %1718 = vmatpush1.msra.mxu0 0.0
      %1719 = vmatprep.subr.mxu0 0.0
      %1720 = vmatpush1.msra.mxu0 0.0
      %1721 = vmatprep.subr.mxu0 0.0
      %1722 = vmatpush1.msra.mxu0 0.0
      %1723 = vmatprep.subr.mxu0 0.0
      %1724 = vmatpush1.msra.mxu0 0.0
      %1725 = vmatprep.subr.mxu0 0.0
      %1726 = vmatpush1.msra.mxu0 0.0
      %1727 = vmatprep.subr.mxu0 0.0
      %1728 = vmatpush1.msra.mxu0 0.0
      %1729 = vmatprep.subr.mxu0 0.0
      %1730 = vmatpush1.msra.mxu0 0.0
      %1731 = vmatprep.subr.mxu0 0.0
      %1732 = vmatpush1.msra.mxu0 0.0
      %1733 = vmatprep.subr.mxu0 0.0
      %1734 = vmatpush1.msra.mxu0 0.0
      %1735 = vmatprep.subr.mxu0 0.0
      %1736 = vmatpush1.msra.mxu0 0.0
      %1737 = vmatprep.subr.mxu0 0.0
      %1738 = vmatpush1.msra.mxu0 0.0
      %1739 = vmatprep.subr.mxu0 0.0
      %1740 = vmatpush1.msra.mxu0 0.0
      %1741 = vmatprep.subr.mxu0 0.0
      %1742 = vmatpush1.msra.mxu0 0.0
      %1743 = vmatprep.subr.mxu0 0.0
      %1744 = vmatpush1.msra.mxu0 0.0
      %1745 = vmatprep.subr.mxu0 0.0
      %1746 = vmatpush1.msra.mxu0 0.0
      %1747 = vmatprep.subr.mxu0 0.0
      %1748 = vmatpush1.msra.mxu0 0.0
      %1749 = vmatprep.subr.mxu0 0.0
      %1750 = vmatpush1.msra.mxu0 0.0
      %1751 = vmatprep.mubr.f32.mxu0 0.0
      %1752 = vmatmul.mubr.f32.gmra.mrb[0].mxu0 %v1471
      %v1753 = vpop.f32.mrb[0].mxu0
      %v1754 = vadd.f32 %v1684, %v1753
      %v1755 = vpop.f32.mrb[0].mxu0
      %1756 = vdwg.mxu0
      %v1757 = vadd.f32 %v1366, %v1754
      %s1758 = scalar_lea.vmem %s3, 816
      %v1759 = vld [vmem:[%s1758] sm:$0xff]
      %v1760 = vld [vmem:[%s1758 + $0x8] sm:$0xff]
      %v1761 = vld [vmem:[%s1758 + $0x10] sm:$0xff]
      %v1762 = vld [vmem:[%s1758 + $0x18] sm:$0xff]
      %v1763 = vld [vmem:[%s1758 + $0x20] sm:$0xff]
      %v1764 = vld [vmem:[%s1758 + $0x28] sm:$0xff]
      %v1765 = vld [vmem:[%s1758 + $0x30] sm:$0xff]
      %v1766 = vld [vmem:[%s1758 + $0x38] sm:$0xff]
      %v1767 = vld [vmem:[%s1758 + $0x40] sm:$0xff]
      %v1768 = vld [vmem:[%s1758 + $0x48] sm:$0xff]
      %v1769 = vld [vmem:[%s1758 + $0x50] sm:$0xff]
      %v1770 = vld [vmem:[%s1758 + $0x58] sm:$0xff]
      %v1771 = vld [vmem:[%s1758 + $0x60] sm:$0xff]
      %v1772 = vld [vmem:[%s1758 + $0x68] sm:$0xff]
      %v1773 = vld [vmem:[%s1758 + $0x70] sm:$0xff]
      %v1774 = vld [vmem:[%s1758 + $0x78] sm:$0xff]
      %v1775 = vld [vmem:[%s1758 + $0x80] sm:$0xff]
      %v1776 = vld [vmem:[%s1758 + $0x88] sm:$0xff]
      %v1777 = vld [vmem:[%s1758 + $0x90] sm:$0xff]
      %v1778 = vld [vmem:[%s1758 + $0x98] sm:$0xff]
      %v1779 = vld [vmem:[%s1758 + $0xa0] sm:$0xff]
      %v1780 = vld [vmem:[%s1758 + $0xa8] sm:$0xff]
      %v1781 = vld [vmem:[%s1758 + $0xb0] sm:$0xff]
      %v1782 = vld [vmem:[%s1758 + $0xb8] sm:$0xff]
      %v1783 = vld [vmem:[%s1758 + $0xc0] sm:$0xff]
      %v1784 = vld [vmem:[%s1758 + $0xc8] sm:$0xff]
      %v1785 = vld [vmem:[%s1758 + $0xd0] sm:$0xff]
      %v1786 = vld [vmem:[%s1758 + $0xd8] sm:$0xff]
      %v1787 = vld [vmem:[%s1758 + $0xe0] sm:$0xff]
      %v1788 = vld [vmem:[%s1758 + $0xe8] sm:$0xff]
      %v1789 = vld [vmem:[%s1758 + $0xf0] sm:$0xff]
      %v1790 = vld [vmem:[%s1758 + $0xf8] sm:$0xff]
      %v1791 = vld [vmem:[%s1758 + $0x100] sm:$0xff]
      %v1792 = vld [vmem:[%s1758 + $0x108] sm:$0xff]
      %v1793 = vld [vmem:[%s1758 + $0x110] sm:$0xff]
      %v1794 = vld [vmem:[%s1758 + $0x118] sm:$0xff]
      %v1795 = vld [vmem:[%s1758 + $0x120] sm:$0xff]
      %v1796 = vld [vmem:[%s1758 + $0x128] sm:$0xff]
      %v1797 = vld [vmem:[%s1758 + $0x130] sm:$0xff]
      %v1798 = vld [vmem:[%s1758 + $0x138] sm:$0xff]
      %v1799 = vld [vmem:[%s1758 + $0x140] sm:$0xff]
      %v1800 = vld [vmem:[%s1758 + $0x148] sm:$0xff]
      %v1801 = vld [vmem:[%s1758 + $0x150] sm:$0xff]
      %v1802 = vld [vmem:[%s1758 + $0x158] sm:$0xff]
      %v1803 = vld [vmem:[%s1758 + $0x160] sm:$0xff]
      %v1804 = vld [vmem:[%s1758 + $0x168] sm:$0xff]
      %v1805 = vld [vmem:[%s1758 + $0x170] sm:$0xff]
      %v1806 = vld [vmem:[%s1758 + $0x178] sm:$0xff]
      %v1807 = vld [vmem:[%s1758 + $0x180] sm:$0xff]
      %v1808 = vld [vmem:[%s1758 + $0x188] sm:$0xff]
      %v1809 = vld [vmem:[%s1758 + $0x190] sm:$0xff]
      %v1810 = vld [vmem:[%s1758 + $0x198] sm:$0xff]
      %v1811 = vld [vmem:[%s1758 + $0x1a0] sm:$0xff]
      %v1812 = vld [vmem:[%s1758 + $0x1a8] sm:$0xff]
      %v1813 = vld [vmem:[%s1758 + $0x1b0] sm:$0xff]
      %v1814 = vld [vmem:[%s1758 + $0x1b8] sm:$0xff]
      %v1815 = vld [vmem:[%s1758 + $0x1c0] sm:$0xff]
      %v1816 = vld [vmem:[%s1758 + $0x1c8] sm:$0xff]
      %v1817 = vld [vmem:[%s1758 + $0x1d0] sm:$0xff]
      %v1818 = vld [vmem:[%s1758 + $0x1d8] sm:$0xff]
      %v1819 = vld [vmem:[%s1758 + $0x1e0] sm:$0xff]
      %v1820 = vld [vmem:[%s1758 + $0x1e8] sm:$0xff]
      %v1821 = vld [vmem:[%s1758 + $0x1f0] sm:$0xff]
      %v1822 = vld [vmem:[%s1758 + $0x1f8] sm:$0xff]
      %v1823 = vld [vmem:[%s1758 + $0x200] sm:$0xff]
      %v1824 = vld [vmem:[%s1758 + $0x208] sm:$0xff]
      %v1825 = vld [vmem:[%s1758 + $0x210] sm:$0xff]
      %v1826 = vld [vmem:[%s1758 + $0x218] sm:$0xff]
      %v1827 = vld [vmem:[%s1758 + $0x220] sm:$0xff]
      %v1828 = vld [vmem:[%s1758 + $0x228] sm:$0xff]
      %v1829 = vld [vmem:[%s1758 + $0x230] sm:$0xff]
      %v1830 = vld [vmem:[%s1758 + $0x238] sm:$0xff]
      %v1831 = vld [vmem:[%s1758 + $0x240] sm:$0xff]
      %v1832 = vld [vmem:[%s1758 + $0x248] sm:$0xff]
      %v1833 = vld [vmem:[%s1758 + $0x250] sm:$0xff]
      %v1834 = vld [vmem:[%s1758 + $0x258] sm:$0xff]
      %v1835 = vld [vmem:[%s1758 + $0x260] sm:$0xff]
      %v1836 = vld [vmem:[%s1758 + $0x268] sm:$0xff]
      %v1837 = vld [vmem:[%s1758 + $0x270] sm:$0xff]
      %v1838 = vld [vmem:[%s1758 + $0x278] sm:$0xff]
      %v1839 = vld [vmem:[%s1758 + $0x280] sm:$0xff]
      %v1840 = vld [vmem:[%s1758 + $0x288] sm:$0xff]
      %v1841 = vld [vmem:[%s1758 + $0x290] sm:$0xff]
      %v1842 = vld [vmem:[%s1758 + $0x298] sm:$0xff]
      %v1843 = vld [vmem:[%s1758 + $0x2a0] sm:$0xff]
      %v1844 = vld [vmem:[%s1758 + $0x2a8] sm:$0xff]
      %v1845 = vld [vmem:[%s1758 + $0x2b0] sm:$0xff]
      %v1846 = vld [vmem:[%s1758 + $0x2b8] sm:$0xff]
      %v1847 = vld [vmem:[%s1758 + $0x2c0] sm:$0xff]
      %v1848 = vld [vmem:[%s1758 + $0x2c8] sm:$0xff]
      %v1849 = vld [vmem:[%s1758 + $0x2d0] sm:$0xff]
      %v1850 = vld [vmem:[%s1758 + $0x2d8] sm:$0xff]
      %v1851 = vld [vmem:[%s1758 + $0x2e0] sm:$0xff]
      %v1852 = vld [vmem:[%s1758 + $0x2e8] sm:$0xff]
      %v1853 = vld [vmem:[%s1758 + $0x2f0] sm:$0xff]
      %v1854 = vld [vmem:[%s1758 + $0x2f8] sm:$0xff]
      %v1855 = vld [vmem:[%s1758 + $0x300] sm:$0xff]
      %v1856 = vld [vmem:[%s1758 + $0x308] sm:$0xff]
      %v1857 = vld [vmem:[%s1758 + $0x310] sm:$0xff]
      %v1858 = vld [vmem:[%s1758 + $0x318] sm:$0xff]
      %v1859 = vld [vmem:[%s1758 + $0x320] sm:$0xff]
      %v1860 = vld [vmem:[%s1758 + $0x328] sm:$0x3]
      %v1867 = vrot.slane %v1359, 1
      %v1868 = vrot.slane %v1360, 1
      %v1869 = vrot.slane %v1361, 1
      %v1870 = vrot.slane %v1362, 1
      %v1871 = vrot.slane %v1363, 1
      %v1872 = vrot.slane %v1364, 1
      %v1873 = vrot.slane %v1365, 1
      %v1880 = vsel %vm1469, %v1873, 0
      %v1883 = vsel %vm1473, %v1860, 0
      %1885 = vmatprep.subr.mxu0 0.0
      %1886 = vmatpush1.msra.mxu0 %v1759
      %1887 = vmatprep.subr.mxu0 0.0
      %1888 = vmatpush1.msra.mxu0 %v1760
      %1889 = vmatprep.subr.mxu0 0.0
      %1890 = vmatpush1.msra.mxu0 %v1761
      %1891 = vmatprep.subr.mxu0 0.0
      %1892 = vmatpush1.msra.mxu0 %v1762
      %1893 = vmatprep.subr.mxu0 0.0
      %1894 = vmatpush1.msra.mxu0 %v1763
      %1895 = vmatprep.subr.mxu0 0.0
      %1896 = vmatpush1.msra.mxu0 %v1764
      %1897 = vmatprep.subr.mxu0 0.0
      %1898 = vmatpush1.msra.mxu0 %v1765
      %1899 = vmatprep.subr.mxu0 0.0
      %1900 = vmatpush1.msra.mxu0 %v1766
      %1901 = vmatprep.subr.mxu0 0.0
      %1902 = vmatpush1.msra.mxu0 %v1767
      %1903 = vmatprep.subr.mxu0 0.0
      %1904 = vmatpush1.msra.mxu0 %v1768
      %1905 = vmatprep.subr.mxu0 0.0
      %1906 = vmatpush1.msra.mxu0 %v1769
      %1907 = vmatprep.subr.mxu0 0.0
      %1908 = vmatpush1.msra.mxu0 %v1770
      %1909 = vmatprep.subr.mxu0 0.0
      %1910 = vmatpush1.msra.mxu0 %v1771
      %1911 = vmatprep.subr.mxu0 0.0
      %1912 = vmatpush1.msra.mxu0 %v1772
      %1913 = vmatprep.subr.mxu0 0.0
      %1914 = vmatpush1.msra.mxu0 %v1773
      %1915 = vmatprep.subr.mxu0 0.0
      %1916 = vmatpush1.msra.mxu0 %v1774
      %1917 = vmatprep.subr.mxu0 0.0
      %1918 = vmatpush1.msra.mxu0 %v1775
      %1919 = vmatprep.subr.mxu0 0.0
      %1920 = vmatpush1.msra.mxu0 %v1776
      %1921 = vmatprep.subr.mxu0 0.0
      %1922 = vmatpush1.msra.mxu0 %v1777
      %1923 = vmatprep.subr.mxu0 0.0
      %1924 = vmatpush1.msra.mxu0 %v1778
      %1925 = vmatprep.subr.mxu0 0.0
      %1926 = vmatpush1.msra.mxu0 %v1779
      %1927 = vmatprep.subr.mxu0 0.0
      %1928 = vmatpush1.msra.mxu0 %v1780
      %1929 = vmatprep.subr.mxu0 0.0
      %1930 = vmatpush1.msra.mxu0 %v1781
      %1931 = vmatprep.subr.mxu0 0.0
      %1932 = vmatpush1.msra.mxu0 %v1782
      %1933 = vmatprep.subr.mxu0 0.0
      %1934 = vmatpush1.msra.mxu0 %v1783
      %1935 = vmatprep.subr.mxu0 0.0
      %1936 = vmatpush1.msra.mxu0 %v1784
      %1937 = vmatprep.subr.mxu0 0.0
      %1938 = vmatpush1.msra.mxu0 %v1785
      %1939 = vmatprep.subr.mxu0 0.0
      %1940 = vmatpush1.msra.mxu0 %v1786
      %1941 = vmatprep.subr.mxu0 0.0
      %1942 = vmatpush1.msra.mxu0 %v1787
      %1943 = vmatprep.subr.mxu0 0.0
      %1944 = vmatpush1.msra.mxu0 %v1788
      %1945 = vmatprep.subr.mxu0 0.0
      %1946 = vmatpush1.msra.mxu0 %v1789
      %1947 = vmatprep.subr.mxu0 0.0
      %1948 = vmatpush1.msra.mxu0 %v1790
      %1949 = vmatprep.mubr.f32.mxu0 %v1868
      %1950 = vmatmul.mubr.f32.gmra.mrb[0].mxu0 %v1867
      %v1951 = vpop.f32.mrb[0].mxu0
      %v1952 = vadd.f32 0.0, %v1951
      %v1953 = vpop.f32.mrb[0].mxu0
      %1954 = vdwg.mxu0
      %1955 = vmatprep.subr.mxu0 0.0
      %1956 = vmatpush1.msra.mxu0 %v1791
      %1957 = vmatprep.subr.mxu0 0.0
      %1958 = vmatpush1.msra.mxu0 %v1792
      %1959 = vmatprep.subr.mxu0 0.0
      %1960 = vmatpush1.msra.mxu0 %v1793
      %1961 = vmatprep.subr.mxu0 0.0
      %1962 = vmatpush1.msra.mxu0 %v1794
      %1963 = vmatprep.subr.mxu0 0.0
      %1964 = vmatpush1.msra.mxu0 %v1795
      %1965 = vmatprep.subr.mxu0 0.0
      %1966 = vmatpush1.msra.mxu0 %v1796
      %1967 = vmatprep.subr.mxu0 0.0
      %1968 = vmatpush1.msra.mxu0 %v1797
      %1969 = vmatprep.subr.mxu0 0.0
      %1970 = vmatpush1.msra.mxu0 %v1798
      %1971 = vmatprep.subr.mxu0 0.0
      %1972 = vmatpush1.msra.mxu0 %v1799
      %1973 = vmatprep.subr.mxu0 0.0
      %1974 = vmatpush1.msra.mxu0 %v1800
      %1975 = vmatprep.subr.mxu0 0.0
      %1976 = vmatpush1.msra.mxu0 %v1801
      %1977 = vmatprep.subr.mxu0 0.0
      %1978 = vmatpush1.msra.mxu0 %v1802
      %1979 = vmatprep.subr.mxu0 0.0
      %1980 = vmatpush1.msra.mxu0 %v1803
      %1981 = vmatprep.subr.mxu0 0.0
      %1982 = vmatpush1.msra.mxu0 %v1804
      %1983 = vmatprep.subr.mxu0 0.0
      %1984 = vmatpush1.msra.mxu0 %v1805
      %1985 = vmatprep.subr.mxu0 0.0
      %1986 = vmatpush1.msra.mxu0 %v1806
      %1987 = vmatprep.subr.mxu0 0.0
      %1988 = vmatpush1.msra.mxu0 %v1807
      %1989 = vmatprep.subr.mxu0 0.0
      %1990 = vmatpush1.msra.mxu0 %v1808
      %1991 = vmatprep.subr.mxu0 0.0
      %1992 = vmatpush1.msra.mxu0 %v1809
      %1993 = vmatprep.subr.mxu0 0.0
      %1994 = vmatpush1.msra.mxu0 %v1810
      %1995 = vmatprep.subr.mxu0 0.0
      %1996 = vmatpush1.msra.mxu0 %v1811
      %1997 = vmatprep.subr.mxu0 0.0
      %1998 = vmatpush1.msra.mxu0 %v1812
      %1999 = vmatprep.subr.mxu0 0.0
      %2000 = vmatpush1.msra.mxu0 %v1813
      %2001 = vmatprep.subr.mxu0 0.0
      %2002 = vmatpush1.msra.mxu0 %v1814
      %2003 = vmatprep.subr.mxu0 0.0
      %2004 = vmatpush1.msra.mxu0 %v1815
      %2005 = vmatprep.subr.mxu0 0.0
      %2006 = vmatpush1.msra.mxu0 %v1816
      %2007 = vmatprep.subr.mxu0 0.0
      %2008 = vmatpush1.msra.mxu0 %v1817
      %2009 = vmatprep.subr.mxu0 0.0
      %2010 = vmatpush1.msra.mxu0 %v1818
      %2011 = vmatprep.subr.mxu0 0.0
      %2012 = vmatpush1.msra.mxu0 %v1819
      %2013 = vmatprep.subr.mxu0 0.0
      %2014 = vmatpush1.msra.mxu0 %v1820
      %2015 = vmatprep.subr.mxu0 0.0
      %2016 = vmatpush1.msra.mxu0 %v1821
      %2017 = vmatprep.subr.mxu0 0.0
      %2018 = vmatpush1.msra.mxu0 %v1822
      %2019 = vmatprep.mubr.f32.mxu0 %v1870
      %2020 = vmatmul.mubr.f32.gmra.mrb[0].mxu0 %v1869
      %v2021 = vpop.f32.mrb[0].mxu0
      %v2022 = vadd.f32 %v1952, %v2021
      %v2023 = vpop.f32.mrb[0].mxu0
      %2024 = vdwg.mxu0
      %2025 = vmatprep.subr.mxu0 0.0
      %2026 = vmatpush1.msra.mxu0 %v1823
      %2027 = vmatprep.subr.mxu0 0.0
      %2028 = vmatpush1.msra.mxu0 %v1824
      %2029 = vmatprep.subr.mxu0 0.0
      %2030 = vmatpush1.msra.mxu0 %v1825
      %2031 = vmatprep.subr.mxu0 0.0
      %2032 = vmatpush1.msra.mxu0 %v1826
      %2033 = vmatprep.subr.mxu0 0.0
      %2034 = vmatpush1.msra.mxu0 %v1827
      %2035 = vmatprep.subr.mxu0 0.0
      %2036 = vmatpush1.msra.mxu0 %v1828
      %2037 = vmatprep.subr.mxu0 0.0
      %2038 = vmatpush1.msra.mxu0 %v1829
      %2039 = vmatprep.subr.mxu0 0.0
      %2040 = vmatpush1.msra.mxu0 %v1830
      %2041 = vmatprep.subr.mxu0 0.0
      %2042 = vmatpush1.msra.mxu0 %v1831
      %2043 = vmatprep.subr.mxu0 0.0
      %2044 = vmatpush1.msra.mxu0 %v1832
      %2045 = vmatprep.subr.mxu0 0.0
      %2046 = vmatpush1.msra.mxu0 %v1833
      %2047 = vmatprep.subr.mxu0 0.0
      %2048 = vmatpush1.msra.mxu0 %v1834
      %2049 = vmatprep.subr.mxu0 0.0
      %2050 = vmatpush1.msra.mxu0 %v1835
      %2051 = vmatprep.subr.mxu0 0.0
      %2052 = vmatpush1.msra.mxu0 %v1836
      %2053 = vmatprep.subr.mxu0 0.0
      %2054 = vmatpush1.msra.mxu0 %v1837
      %2055 = vmatprep.subr.mxu0 0.0
      %2056 = vmatpush1.msra.mxu0 %v1838
      %2057 = vmatprep.subr.mxu0 0.0
      %2058 = vmatpush1.msra.mxu0 %v1839
      %2059 = vmatprep.subr.mxu0 0.0
      %2060 = vmatpush1.msra.mxu0 %v1840
      %2061 = vmatprep.subr.mxu0 0.0
      %2062 = vmatpush1.msra.mxu0 %v1841
      %2063 = vmatprep.subr.mxu0 0.0
      %2064 = vmatpush1.msra.mxu0 %v1842
      %2065 = vmatprep.subr.mxu0 0.0
      %2066 = vmatpush1.msra.mxu0 %v1843
      %2067 = vmatprep.subr.mxu0 0.0
      %2068 = vmatpush1.msra.mxu0 %v1844
      %2069 = vmatprep.subr.mxu0 0.0
      %2070 = vmatpush1.msra.mxu0 %v1845
      %2071 = vmatprep.subr.mxu0 0.0
      %2072 = vmatpush1.msra.mxu0 %v1846
      %2073 = vmatprep.subr.mxu0 0.0
      %2074 = vmatpush1.msra.mxu0 %v1847
      %2075 = vmatprep.subr.mxu0 0.0
      %2076 = vmatpush1.msra.mxu0 %v1848
      %2077 = vmatprep.subr.mxu0 0.0
      %2078 = vmatpush1.msra.mxu0 %v1849
      %2079 = vmatprep.subr.mxu0 0.0
      %2080 = vmatpush1.msra.mxu0 %v1850
      %2081 = vmatprep.subr.mxu0 0.0
      %2082 = vmatpush1.msra.mxu0 %v1851
      %2083 = vmatprep.subr.mxu0 0.0
      %2084 = vmatpush1.msra.mxu0 %v1852
      %2085 = vmatprep.subr.mxu0 0.0
      %2086 = vmatpush1.msra.mxu0 %v1853
      %2087 = vmatprep.subr.mxu0 0.0
      %2088 = vmatpush1.msra.mxu0 %v1854
      %2089 = vmatprep.mubr.f32.mxu0 %v1872
      %2090 = vmatmul.mubr.f32.gmra.mrb[0].mxu0 %v1871
      %v2091 = vpop.f32.mrb[0].mxu0
      %v2092 = vadd.f32 %v2022, %v2091
      %v2093 = vpop.f32.mrb[0].mxu0
      %2094 = vdwg.mxu0
      %2095 = vmatprep.subr.mxu0 0.0
      %2096 = vmatpush1.msra.mxu0 %v1855
      %2097 = vmatprep.subr.mxu0 0.0
      %2098 = vmatpush1.msra.mxu0 %v1856
      %2099 = vmatprep.subr.mxu0 0.0
      %2100 = vmatpush1.msra.mxu0 %v1857
      %2101 = vmatprep.subr.mxu0 0.0
      %2102 = vmatpush1.msra.mxu0 %v1858
      %2103 = vmatprep.subr.mxu0 0.0
      %2104 = vmatpush1.msra.mxu0 %v1859
      %2105 = vmatprep.subr.mxu0 0.0
      %2106 = vmatpush1.msra.mxu0 %v1883
      %2107 = vmatprep.subr.mxu0 0.0
      %2108 = vmatpush1.msra.mxu0 0.0
      %2109 = vmatprep.subr.mxu0 0.0
      %2110 = vmatpush1.msra.mxu0 0.0
      %2111 = vmatprep.subr.mxu0 0.0
      %2112 = vmatpush1.msra.mxu0 0.0
      %2113 = vmatprep.subr.mxu0 0.0
      %2114 = vmatpush1.msra.mxu0 0.0
      %2115 = vmatprep.subr.mxu0 0.0
      %2116 = vmatpush1.msra.mxu0 0.0
      %2117 = vmatprep.subr.mxu0 0.0
      %2118 = vmatpush1.msra.mxu0 0.0
      %2119 = vmatprep.subr.mxu0 0.0
      %2120 = vmatpush1.msra.mxu0 0.0
      %2121 = vmatprep.subr.mxu0 0.0
      %2122 = vmatpush1.msra.mxu0 0.0
      %2123 = vmatprep.subr.mxu0 0.0
      %2124 = vmatpush1.msra.mxu0 0.0
      %2125 = vmatprep.subr.mxu0 0.0
      %2126 = vmatpush1.msra.mxu0 0.0
      %2127 = vmatprep.subr.mxu0 0.0
      %2128 = vmatpush1.msra.mxu0 0.0
      %2129 = vmatprep.subr.mxu0 0.0
      %2130 = vmatpush1.msra.mxu0 0.0
      %2131 = vmatprep.subr.mxu0 0.0
      %2132 = vmatpush1.msra.mxu0 0.0
      %2133 = vmatprep.subr.mxu0 0.0
      %2134 = vmatpush1.msra.mxu0 0.0
      %2135 = vmatprep.subr.mxu0 0.0
      %2136 = vmatpush1.msra.mxu0 0.0
      %2137 = vmatprep.subr.mxu0 0.0
      %2138 = vmatpush1.msra.mxu0 0.0
      %2139 = vmatprep.subr.mxu0 0.0
      %2140 = vmatpush1.msra.mxu0 0.0
      %2141 = vmatprep.subr.mxu0 0.0
      %2142 = vmatpush1.msra.mxu0 0.0
      %2143 = vmatprep.subr.mxu0 0.0
      %2144 = vmatpush1.msra.mxu0 0.0
      %2145 = vmatprep.subr.mxu0 0.0
      %2146 = vmatpush1.msra.mxu0 0.0
      %2147 = vmatprep.subr.mxu0 0.0
      %2148 = vmatpush1.msra.mxu0 0.0
      %2149 = vmatprep.subr.mxu0 0.0
      %2150 = vmatpush1.msra.mxu0 0.0
      %2151 = vmatprep.subr.mxu0 0.0
      %2152 = vmatpush1.msra.mxu0 0.0
      %2153 = vmatprep.subr.mxu0 0.0
      %2154 = vmatpush1.msra.mxu0 0.0
      %2155 = vmatprep.subr.mxu0 0.0
      %2156 = vmatpush1.msra.mxu0 0.0
      %2157 = vmatprep.subr.mxu0 0.0
      %2158 = vmatpush1.msra.mxu0 0.0
      %2159 = vmatprep.mubr.f32.mxu0 0.0
      %2160 = vmatmul.mubr.f32.gmra.mrb[0].mxu0 %v1880
      %v2161 = vpop.f32.mrb[0].mxu0
      %v2162 = vadd.f32 %v2092, %v2161
      %v2163 = vpop.f32.mrb[0].mxu0
      %2164 = vdwg.mxu0
      %v2165 = vadd.f32 %v1757, %v2162
      %v2166 = vmax.f32 %v2165, 0.0
      %v2167 = vld [vmem:[%s5] sm:$0xff]
      %v2168 = vld [vmem:[%s5 + $0x8] sm:$0xff]
      %v2169 = vld [vmem:[%s6] sm:$0x1]
      %vm2170 = vcmask 130048
      %v2172 = vsel %vm2170, %v2166, 0
      %2174 = vmatprep.subr.mxu0 0.0
      %2175 = vmatpush1.msra.mxu0 %v2167
      %2176 = vmatprep.subr.mxu0 0.0
      %2177 = vmatpush1.msra.mxu0 %v2168
      %2178 = vmatprep.subr.mxu0 0.0
      %2179 = vmatpush1.msra.mxu0 0.0
      %2180 = vmatprep.subr.mxu0 0.0
      %2181 = vmatpush1.msra.mxu0 0.0
      %2182 = vmatprep.subr.mxu0 0.0
      %2183 = vmatpush1.msra.mxu0 0.0
      %2184 = vmatprep.subr.mxu0 0.0
      %2185 = vmatpush1.msra.mxu0 0.0
      %2186 = vmatprep.subr.mxu0 0.0
      %2187 = vmatpush1.msra.mxu0 0.0
      %2188 = vmatprep.subr.mxu0 0.0
      %2189 = vmatpush1.msra.mxu0 0.0
      %2190 = vmatprep.subr.mxu0 0.0
      %2191 = vmatpush1.msra.mxu0 0.0
      %2192 = vmatprep.subr.mxu0 0.0
      %2193 = vmatpush1.msra.mxu0 0.0
      %2194 = vmatprep.subr.mxu0 0.0
      %2195 = vmatpush1.msra.mxu0 0.0
      %2196 = vmatprep.subr.mxu0 0.0
      %2197 = vmatpush1.msra.mxu0 0.0
      %2198 = vmatprep.subr.mxu0 0.0
      %2199 = vmatpush1.msra.mxu0 0.0
      %2200 = vmatprep.subr.mxu0 0.0
      %2201 = vmatpush1.msra.mxu0 0.0
      %2202 = vmatprep.subr.mxu0 0.0
      %2203 = vmatpush1.msra.mxu0 0.0
      %2204 = vmatprep.subr.mxu0 0.0
      %2205 = vmatpush1.msra.mxu0 0.0
      %2206 = vmatprep.subr.mxu0 0.0
      %2207 = vmatpush1.msra.mxu0 0.0
      %2208 = vmatprep.subr.mxu0 0.0
      %2209 = vmatpush1.msra.mxu0 0.0
      %2210 = vmatprep.subr.mxu0 0.0
      %2211 = vmatpush1.msra.mxu0 0.0
      %2212 = vmatprep.subr.mxu0 0.0
      %2213 = vmatpush1.msra.mxu0 0.0
      %2214 = vmatprep.subr.mxu0 0.0
      %2215 = vmatpush1.msra.mxu0 0.0
      %2216 = vmatprep.subr.mxu0 0.0
      %2217 = vmatpush1.msra.mxu0 0.0
      %2218 = vmatprep.subr.mxu0 0.0
      %2219 = vmatpush1.msra.mxu0 0.0
      %2220 = vmatprep.subr.mxu0 0.0
      %2221 = vmatpush1.msra.mxu0 0.0
      %2222 = vmatprep.subr.mxu0 0.0
      %2223 = vmatpush1.msra.mxu0 0.0
      %2224 = vmatprep.subr.mxu0 0.0
      %2225 = vmatpush1.msra.mxu0 0.0
      %2226 = vmatprep.subr.mxu0 0.0
      %2227 = vmatpush1.msra.mxu0 0.0
      %2228 = vmatprep.subr.mxu0 0.0
      %2229 = vmatpush1.msra.mxu0 0.0
      %2230 = vmatprep.subr.mxu0 0.0
      %2231 = vmatpush1.msra.mxu0 0.0
      %2232 = vmatprep.subr.mxu0 0.0
      %2233 = vmatpush1.msra.mxu0 0.0
      %2234 = vmatprep.subr.mxu0 0.0
      %2235 = vmatpush1.msra.mxu0 0.0
      %2236 = vmatprep.subr.mxu0 0.0
      %2237 = vmatpush1.msra.mxu0 0.0
      %2238 = vmatprep.mubr.f32.mxu0 0.0
      %2239 = vmatmul.mubr.f32.gmra.mrb[0].mxu0 %v2172
      %v2240 = vpop.f32.mrb[0].mxu0
      %v2241 = vadd.f32 %v2169, %v2240
      %v2242 = vpop.f32.mrb[0].mxu0
      %2243 = vdwg.mxu0
      %v2244 = vmax.f32 %v2241, -100.0
      %v2245 = vmin.f32 %v2244, 100.0
      %vm2246 = vcmask 73728
      %2247 = vst.msk [vmem:[%s274] sm:$0x1] %vm2246, %v2245
      %p2248 = scmp.lt.s32.totalorder %s18, 1
      %s2249 = scalar_select %p2248, %s18, 1
      %s2250 = scalar_lea.vmem %s7, %s2249
      // Predicated region
      $region49: #{forward.1} parent=47 // pred_check
        %p2251 = pneg %p188
      $region50: #{forward.1} parent=47 // pred_check_branch
        %2253 = sbr.rel (%p2251) target = $region52
      $region51: #{forward.1} parent=47 // pred_region
        _
      $region52: #{forward.1} parent=47 // pred_fallthru
        _
    $region48: #{forward.1} parent=5 // pred_fallthru
      _
    %p2254 = scmp.le.s32.totalorder 2, %s13
    // Predicated region
    $region53: #{forward.1} parent=5 // pred_check
      %p2255 = pneg %p2254
    $region54: #{forward.1} parent=5 // pred_check_branch
      %2257 = sbr.rel (%p2255) target = $region56
    $region55: #{forward.1} parent=5 // pred_region
      %s2258 = ssub.s32 %s13, 2
      // Predicated region
      $region57: #{forward.1} parent=55 // pred_check
        %p2259 = pneg %p194
      $region58: #{forward.1} parent=55 // pred_check_branch
        %2261 = sbr.rel (%p2259) target = $region60
      $region59: #{forward.1} parent=55 // pred_region
        %p2262 = scmp.lt.s32.totalorder %s19, 1
        %s2263 = scalar_select %p2262, %s19, 1
        %s2264 = scalar_lea.vmem %s7, %s2263
      $region60: #{forward.1} parent=55 // pred_fallthru
        _
    $region56: #{forward.1} parent=5 // pred_fallthru
      _
  $region6: #{forward.1} parent=0 // loop_footer
    %s17 = sadd.s32 1, %s13
  $region7: #{forward.1} parent=0 // loop_footer_branch
    %12 = sbr.rel target = $region3
  $region8: #{forward.1} parent=0 // loop_exit
    _

</llo_original>
